<compile_context>
chip_gen: v5e
topology: v5e:2x2
jax: 0.10.0
libtpu: 0.0.40
codegen_flags: <defaults>
</compile_context>

<pallas_src>
import functools
import math

import jax
import jax.numpy as jnp
from jax.experimental import pallas as pl
from jax.experimental.pallas import tpu as pltpu


# ----------------------------- shared elementwise ----------------------------

def _gelu(x):
    c = math.sqrt(2.0 / math.pi)
    return 0.5 * x * (1.0 + jnp.tanh(c * (x + 0.044715 * x * x * x)))


# In-kernel LayerNorm: matches the PyTorch module (unbiased std, eps added to
# the std OUTSIDE the sqrt).  Exact divide — approx reciprocal is reserved for
# the softmax denominator only (review: avoid compounding error across layers).
def _ln(x, a, b, eps):
    mean = jnp.mean(x, axis=-1, keepdims=True)
    xc = x - mean
    var = jnp.sum(xc * xc, axis=-1, keepdims=True) * (1.0 / (x.shape[-1] - 1))
    return a * (xc / (jnp.sqrt(var) + eps)) + b


# Reference LayerNorm for the pure-JAX check (same math, written plainly).
def _ln_ref(x, a, b, eps):
    mean = jnp.mean(x, axis=-1, keepdims=True)
    xc = x - mean
    var = jnp.sum(xc * xc, axis=-1, keepdims=True) / (x.shape[-1] - 1)
    return a * xc / (jnp.sqrt(var) + eps) + b


# ------------------------------- fused kernel --------------------------------

def bert_fused_kernel(eps, nh,
                      x_ref, bias_ref,
                      wqkv_ref, bqkv_ref, wo_ref, bo_ref, ln1a_ref, ln1b_ref,
                      w1_ref, b1_ref, w2_ref, b2_ref, ln2a_ref, ln2b_ref,
                      outw_ref, outb_ref,
                      o_ref,
                      x_sc):
    """grid = (batch, layer).  Residual stream lives in VMEM scratch x_sc."""
    l = pl.program_id(1)
    n_layers = pl.num_programs(1)

    # Load the embedding block only once per batch element (layer 0).
    @pl.when(l == 0)
    def _():
        x_sc[...] = x_ref[0]

    x = x_sc[...]                           # (S, H) f32 residual stream
    S, H = x.shape
    dk = H // nh
    scale = 1.0 / math.sqrt(dk)
    dt = wqkv_ref.dtype                     # MXU compute dtype (bf16 or f32)

    bias = bias_ref[0]                      # (1, S) additive key mask (0 / -1e9)

    # ---- multi-head self-attention sublayer (pre-norm residual) ----
    xn = _ln(x, ln1a_ref[0], ln1b_ref[0], eps)
    # Single lane-dense QKV matmul: (S, H) @ (H, 3H), f32 accumulate.
    qkv = jnp.dot(xn.astype(dt), wqkv_ref[0],
                  preferred_element_type=jnp.float32) + bqkv_ref[0]   # (S, 3H)

    def split_heads(off):
        # Static lane slices + stack along a new major dim -> (nh, S, dk).
        return jnp.stack(
            [qkv[:, off + h * dk: off + (h + 1) * dk] for h in range(nh)],
            axis=0).astype(dt)

    q = split_heads(0)
    k = split_heads(H)
    v = split_heads(2 * H)

    scores = jnp.einsum('hqd,hkd->hqk', q, k,
                        preferred_element_type=jnp.float32) * scale + bias
    scores = scores - jnp.max(scores, axis=-1, keepdims=True)
    p = jnp.exp(scores)
    p = p * pl.reciprocal(jnp.sum(p, axis=-1, keepdims=True), approx=True)

    ctx = jnp.einsum('hqk,hkd->hqd', p.astype(dt), v,
                     preferred_element_type=jnp.float32)              # (nh, S, dk)
    # Concat heads back to (S, H), then ONE output-projection matmul.
    ctx = jnp.concatenate([ctx[h] for h in range(nh)], axis=-1)       # (S, H)
    x = x + jnp.dot(ctx.astype(dt), wo_ref[0],
                    preferred_element_type=jnp.float32) + bo_ref[0]

    # ---- position-wise feed-forward sublayer (pre-norm residual) ----
    xn2 = _ln(x, ln2a_ref[0], ln2b_ref[0], eps)
    h1 = _gelu(jnp.dot(xn2.astype(dt), w1_ref[0],
                       preferred_element_type=jnp.float32) + b1_ref[0])
    x = x + jnp.dot(h1.astype(dt), w2_ref[0],
                    preferred_element_type=jnp.float32) + b2_ref[0]

    x_sc[...] = x

    # ---- output projection at the last layer, lane-dense vocab (padded to 128) ----
    @pl.when(l == n_layers - 1)
    def _():
        o_ref[0] = jnp.dot(x.astype(dt), outw_ref[...],
                           preferred_element_type=jnp.float32) + outb_ref[...]


# ------------------------------ parameter packing -----------------------------

def _pack_layer_params(layers, compute_dtype):
    """Stack per-layer params lane-dense; fuse Q/K/V into one (H, 3H) weight."""
    def st(i):
        return jnp.stack([p[i] for p in layers])

    wq, bq = st(0), st(1)
    wk, bk = st(2), st(3)
    wv, bv = st(4), st(5)
    wo, bo = st(6), st(7)
    ln1a, ln1b = st(8), st(9)
    w1, b1 = st(10), st(11)
    w2, b2 = st(12), st(13)
    ln2a, ln2b = st(14), st(15)

    w_qkv = jnp.concatenate([wq, wk, wv], axis=-1).astype(compute_dtype)  # (L,H,3H)
    b_qkv = jnp.concatenate([bq, bk, bv], axis=-1)                        # (L,1,3H)

    return [w_qkv, b_qkv,
            wo.astype(compute_dtype), bo, ln1a, ln1b,
            w1.astype(compute_dtype), b1, w2.astype(compute_dtype), b2,
            ln2a, ln2b]


def _pad_out_proj(out_w, out_b, compute_dtype):
    H, V = out_w.shape
    Vp = ((V + 127) // 128) * 128
    w = jnp.zeros((H, Vp), jnp.float32).at[:, :V].set(out_w).astype(compute_dtype)
    b = jnp.zeros((1, Vp), jnp.float32).at[:, :V].set(out_b)
    return w, b, Vp


def _round_up(x, m):
    return ((x + m - 1) // m) * m


# ----------------------------------- model -----------------------------------

def bert_forward(tokens, params, num_heads, compute_dtype=jnp.bfloat16, eps=1e-6):
    B, S = tokens.shape
    H = params["tok_w"].shape[-1]
    V = params["out_w"].shape[1]
    L = len(params["layers"])

    S_pad = _round_up(S, 8)   # sublane-align the sequence dim (f32: 8)

    # Embedding gather is glue; the hot path lives in the fused Pallas kernel.
    x = (jnp.take(params["tok_w"], tokens, axis=0)
         + params["pos_w"][None, :, :]).astype(jnp.float32)
    if S_pad != S:
        x = jnp.pad(x, ((0, 0), (0, S_pad - S), (0, 0)))

    # Additive key-mask bias (0 for valid tokens, -1e9 for pad / padded slots);
    # only (B, 1, S_pad) goes to HBM, never a (B, S, S) mask.
    bias = jnp.where(tokens > 0, 0.0, -1e9).astype(jnp.float32).reshape(B, 1, S)
    if S_pad != S:
        bias = jnp.pad(bias, ((0, 0), (0, 0), (0, S_pad - S)),
                       constant_values=-1e9)

    stacked = _pack_layer_params(params["layers"], compute_dtype)
    out_w, out_b, Vp = _pad_out_proj(params["out_w"], params["out_b"], compute_dtype)

    operands = [x, bias] + stacked + [out_w, out_b]

    def batch_spec(a):
        return pl.BlockSpec((1,) + a.shape[1:], lambda b, l: (b, 0, 0))

    def layer_spec(a):
        return pl.BlockSpec((1,) + a.shape[1:], lambda b, l: (l, 0, 0))

    in_specs = ([batch_spec(x), batch_spec(bias)]
                + [layer_spec(a) for a in stacked]
                + [pl.BlockSpec(out_w.shape, lambda b, l: (0, 0)),
                   pl.BlockSpec(out_b.shape, lambda b, l: (0, 0))])

    out_spec = pl.BlockSpec((1, S_pad, Vp), lambda b, l: (b, 0, 0))

    # VMEM budget from the per-grid-step block footprint (x2 double-buffering),
    # plus the residual scratch and slack; clamp against the physical capacity
    # with headroom instead of a hard 64 MiB cap.
    per_step = ((x.size // B) + (bias.size // B)) * 4
    per_step += sum((a.size // L) * a.dtype.itemsize for a in stacked)
    per_step += out_w.size * out_w.dtype.itemsize + out_b.size * 4
    per_step += S_pad * Vp * 4                      # output block
    vmem_need = 2 * per_step + S_pad * H * 4 + (4 << 20)
    try:
        vmem_cap = int(pltpu.get_tpu_info().vmem_capacity_bytes)
    except Exception:
        vmem_cap = 64 << 20                         # conservative fallback (v7x)
    vmem_limit = int(min(max(vmem_need, 16 << 20), vmem_cap - (16 << 20)))

    kernel = functools.partial(bert_fused_kernel, eps, num_heads)

    out = pl.pallas_call(
        kernel,
        out_shape=jax.ShapeDtypeStruct((B, S_pad, Vp), jnp.float32),
        grid=(B, L),
        in_specs=in_specs,
        out_specs=out_spec,
        scratch_shapes=[pltpu.VMEM((S_pad, H), jnp.float32)],
        compiler_params=pltpu.CompilerParams(
            dimension_semantics=("parallel", "arbitrary"),
            vmem_limit_bytes=vmem_limit),
    )(*operands)

    return out[:, :S, :V]


# ------------------------------ pure-JAX reference ---------------------------

def _ref_block(x, mask, p, n_heads):
    (wq, bq, wk, bk, wv, bv, wo, bo, ln1a, ln1b,
     w1, b1, w2, b2, ln2a, ln2b) = p
    B, S, H = x.shape
    dk = H // n_heads
    xn = _ln_ref(x, ln1a, ln1b, 1e-6)
    q = (xn @ wq + bq).reshape(B, S, n_heads, dk).transpose(0, 2, 1, 3)
    k = (xn @ wk + bk).reshape(B, S, n_heads, dk).transpose(0, 2, 1, 3)
    v = (xn @ wv + bv).reshape(B, S, n_heads, dk).transpose(0, 2, 1, 3)
    scores = jnp.einsum('bhqd,bhkd->bhqk', q, k) / math.sqrt(dk)
    scores = jnp.where(mask[:, None, :, :] == 0, -1e9, scores)
    p_attn = jax.nn.softmax(scores, axis=-1)
    ctx = jnp.einsum('bhqk,bhkd->bhqd', p_attn, v).transpose(0, 2, 1, 3).reshape(B, S, H)
    x = x + ctx @ wo + bo
    xn2 = _ln_ref(x, ln2a, ln2b, 1e-6)
    x = x + _gelu(xn2 @ w1 + b1) @ w2 + b2
    return x


def bert_reference(tokens, params, num_heads):
    B, S = tokens.shape
    valid = (tokens > 0).astype(jnp.float32)
    mask = jnp.broadcast_to(valid[:, None, :], (B, S, S))
    x = jnp.take(params["tok_w"], tokens, axis=0) + params["pos_w"][None, :, :]
    for p in params["layers"]:
        x = _ref_block(x, mask, p, num_heads)
    return x @ params["out_w"] + params["out_b"]


# --------------------------------- parameters --------------------------------

def init_params(key, vocab_in, vocab_out, H, d_ff, n_layers, max_len):
    keys = jax.random.split(key, 4 + n_layers)
    tok_w = jax.random.normal(keys[0], (vocab_in, H), jnp.float32) * 0.1
    tok_w = tok_w.at[0].set(0.0)  # padding_idx=0
    pos_w = jax.random.normal(keys[1], (max_len, H), jnp.float32) * 0.1
    out_w = jax.random.normal(keys[2], (H, vocab_out), jnp.float32) * 0.05
    out_b = jax.random.normal(keys[3], (1, vocab_out), jnp.float32) * 0.01

    layers = []
    for i in range(n_layers):
        lk = jax.random.split(keys[4 + i], 12)
        wq = jax.random.normal(lk[0], (H, H), jnp.float32) * 0.05
        bq = jax.random.normal(lk[1], (1, H), jnp.float32) * 0.01
        wk = jax.random.normal(lk[2], (H, H), jnp.float32) * 0.05
        bk = jax.random.normal(lk[3], (1, H), jnp.float32) * 0.01
        wv = jax.random.normal(lk[4], (H, H), jnp.float32) * 0.05
        bv = jax.random.normal(lk[5], (1, H), jnp.float32) * 0.01
        wo = jax.random.normal(lk[6], (H, H), jnp.float32) * 0.05
        bo = jax.random.normal(lk[7], (1, H), jnp.float32) * 0.01
        ln1a = jnp.ones((1, H), jnp.float32)
        ln1b = jnp.zeros((1, H), jnp.float32)
        w1 = jax.random.normal(lk[8], (H, d_ff), jnp.float32) * 0.05
        b1 = jax.random.normal(lk[9], (1, d_ff), jnp.float32) * 0.01
        w2 = jax.random.normal(lk[10], (d_ff, H), jnp.float32) * 0.05
        b2 = jax.random.normal(lk[11], (1, H), jnp.float32) * 0.01
        ln2a = jnp.ones((1, H), jnp.float32)
        ln2b = jnp.zeros((1, H), jnp.float32)
        layers.append([wq, bq, wk, bk, wv, bv, wo, bo, ln1a, ln1b,
                       w1, b1, w2, b2, ln2a, ln2b])
    return {"tok_w": tok_w, "pos_w": pos_w, "out_w": out_w, "out_b": out_b,
            "layers": layers}


# ------------------------------------ main ------------------------------------

if __name__ == "__main__":
    # BERT(max_seq_length=8, vocab_size=10, bert_num_blocks=2,
    #      bert_num_heads=4, hidden_size=32, bert_dropout=0.1)
    B, S = 2, 8
    vocab_size = 10
    hidden = 32
    n_heads = 4
    n_layers = 2
    d_ff = 4 * hidden
    vocab_in = vocab_size + 2    # embedding table size (module adds 2)
    vocab_out = vocab_size + 1   # output projection size (module adds 1)

    key = jax.random.PRNGKey(0)
    k_tok, k_param = jax.random.split(key)
    tokens = jax.random.randint(k_tok, (B, S), 0, vocab_in).astype(jnp.int32)
    tokens = tokens.at[:, -2:].set(0)   # ensure some padding to exercise the mask

    params = init_params(k_param, vocab_in, vocab_out, hidden, d_ff, n_layers, S)

    # bf16 MXU path (production setting) and f32 path (tight correctness check).
    out_bf16 = jax.block_until_ready(
        bert_forward(tokens, params, n_heads, compute_dtype=jnp.bfloat16))
    out_f32 = jax.block_until_ready(
        bert_forward(tokens, params, n_heads, compute_dtype=jnp.float32))

    ref = bert_reference(tokens, params, n_heads)
    assert out_bf16.shape == (B, S, vocab_out), out_bf16.shape
    assert out_f32.shape == (B, S, vocab_out), out_f32.shape

    err32 = float(jnp.max(jnp.abs(out_f32 - ref)))
    assert jnp.allclose(out_f32, ref, atol=5e-3, rtol=5e-3), f"f32 max abs err = {err32}"
    errbf = float(jnp.max(jnp.abs(out_bf16 - ref)))
    assert jnp.allclose(out_bf16, ref, atol=3e-2, rtol=3e-2), f"bf16 max abs err = {errbf}"

    print("KERNEL_OK")
</pallas_src>

<mosaic_0001>
module attributes {stable_mosaic.version = 11 : i64} {
  func.func @bert_fused_kernel(%arg0: i32, %arg1: i32, %arg2: memref<1x8x32xf32, #tpu.memory_space<vmem>>, %arg3: memref<1x1x8xf32, #tpu.memory_space<vmem>>, %arg4: memref<1x32x96xbf16, #tpu.memory_space<vmem>>, %arg5: memref<1x1x96xf32, #tpu.memory_space<vmem>>, %arg6: memref<1x32x32xbf16, #tpu.memory_space<vmem>>, %arg7: memref<1x1x32xf32, #tpu.memory_space<vmem>>, %arg8: memref<1x1x32xf32, #tpu.memory_space<vmem>>, %arg9: memref<1x1x32xf32, #tpu.memory_space<vmem>>, %arg10: memref<1x32x128xbf16, #tpu.memory_space<vmem>>, %arg11: memref<1x1x128xf32, #tpu.memory_space<vmem>>, %arg12: memref<1x128x32xbf16, #tpu.memory_space<vmem>>, %arg13: memref<1x1x32xf32, #tpu.memory_space<vmem>>, %arg14: memref<1x1x32xf32, #tpu.memory_space<vmem>>, %arg15: memref<1x1x32xf32, #tpu.memory_space<vmem>>, %arg16: memref<32x128xbf16, #tpu.memory_space<vmem>>, %arg17: memref<1x128xf32, #tpu.memory_space<vmem>>, %arg18: memref<1x8x128xf32, #tpu.memory_space<vmem>>, %arg19: memref<8x32xf32, #tpu.memory_space<vmem>>) attributes {dimension_semantics = [#tpu.dimension_semantics<parallel>, #tpu.dimension_semantics<arbitrary>], iteration_bounds = array<i64: 2, 2>, scalar_prefetch = 0 : i64, scratch_operands = 1 : i64, tpu.core_type = #tpu.core_type<tc>, window_params = [{transform_indices = @transform_0, window_bounds = array<i64: 1, 8, 32>}, {transform_indices = @transform_1, window_bounds = array<i64: 1, 1, 8>}, {transform_indices = @transform_2, window_bounds = array<i64: 1, 32, 96>}, {transform_indices = @transform_3, window_bounds = array<i64: 1, 1, 96>}, {transform_indices = @transform_4, window_bounds = array<i64: 1, 32, 32>}, {transform_indices = @transform_5, window_bounds = array<i64: 1, 1, 32>}, {transform_indices = @transform_6, window_bounds = array<i64: 1, 1, 32>}, {transform_indices = @transform_7, window_bounds = array<i64: 1, 1, 32>}, {transform_indices = @transform_8, window_bounds = array<i64: 1, 32, 128>}, {transform_indices = @transform_9, window_bounds = array<i64: 1, 1, 128>}, {transform_indices = @transform_10, window_bounds = array<i64: 1, 128, 32>}, {transform_indices = @transform_11, window_bounds = array<i64: 1, 1, 32>}, {transform_indices = @transform_12, window_bounds = array<i64: 1, 1, 32>}, {transform_indices = @transform_13, window_bounds = array<i64: 1, 1, 32>}, {pipeline_mode = #tpu.pipeline_mode<synchronous>, transform_indices = @transform_14, window_bounds = array<i64: 32, 128>}, {pipeline_mode = #tpu.pipeline_mode<synchronous>, transform_indices = @transform_15, window_bounds = array<i64: 1, 128>}, {transform_indices = @transform_16, window_bounds = array<i64: 1, 8, 128>}]} {
    %c0_i32 = arith.constant 0 : i32
    %0 = arith.cmpi eq, %arg1, %c0_i32 : i32
    %1 = arith.extui %0 : i1 to i32
    %c0_i32_0 = arith.constant 0 : i32
    %2 = arith.cmpi ne, %1, %c0_i32_0 : i32
    scf.if %2 {
      %c0_66 = arith.constant 0 : index
      %c0_67 = arith.constant 0 : index
      %c0_68 = arith.constant 0 : index
      %162 = vector.load %arg2[%c0_66, %c0_67, %c0_68] : memref<1x8x32xf32, #tpu.memory_space<vmem>>, vector<1x8x32xf32>
      %163 = vector.shape_cast %162 : vector<1x8x32xf32> to vector<8x32xf32>
      %c0_69 = arith.constant 0 : index
      %c0_70 = arith.constant 0 : index
      %164 = vector.load %arg19[%c0_69, %c0_70] : memref<8x32xf32, #tpu.memory_space<vmem>>, vector<8x32xf32>
      tpu.vector_store %arg19[%c0_69, %c0_70], %163 {strides = array<i32>} : memref<8x32xf32, #tpu.memory_space<vmem>>, vector<8x32xf32>,
    } else {
    }
    %c0 = arith.constant 0 : index
    %c0_1 = arith.constant 0 : index
    %3 = vector.load %arg19[%c0, %c0_1] : memref<8x32xf32, #tpu.memory_space<vmem>>, vector<8x32xf32>
    %c0_2 = arith.constant 0 : index
    %c0_3 = arith.constant 0 : index
    %c0_4 = arith.constant 0 : index
    %4 = vector.load %arg3[%c0_2, %c0_3, %c0_4] : memref<1x1x8xf32, #tpu.memory_space<vmem>>, vector<1x1x8xf32>
    %5 = vector.shape_cast %4 : vector<1x1x8xf32> to vector<1x8xf32>
    %c0_5 = arith.constant 0 : index
    %c0_6 = arith.constant 0 : index
    %c0_7 = arith.constant 0 : index
    %6 = vector.load %arg8[%c0_5, %c0_6, %c0_7] : memref<1x1x32xf32, #tpu.memory_space<vmem>>, vector<1x1x32xf32>
    %7 = vector.shape_cast %6 : vector<1x1x32xf32> to vector<1x32xf32>
    %c0_8 = arith.constant 0 : index
    %c0_9 = arith.constant 0 : index
    %c0_10 = arith.constant 0 : index
    %8 = vector.load %arg9[%c0_8, %c0_9, %c0_10] : memref<1x1x32xf32, #tpu.memory_space<vmem>>, vector<1x1x32xf32>
    %9 = vector.shape_cast %8 : vector<1x1x32xf32> to vector<1x32xf32>
    %cst = arith.constant dense<0.000000e+00> : vector<8xf32>
    %10 = vector.multi_reduction <add>, %3, %cst [1] : vector<8x32xf32> to vector<8xf32>
    %11 = vector.shape_cast %10 : vector<8xf32> to vector<8x1xf32>
    %cst_11 = arith.constant 3.200000e+01 : f32
    %12 = vector.broadcast %cst_11 : f32 to vector<8x1xf32>
    %13 = arith.divf %11, %12 : vector<8x1xf32>
    %14 = vector.broadcast %13 : vector<8x1xf32> to vector<8x32xf32>
    %15 = arith.subf %3, %14 : vector<8x32xf32>
    %16 = arith.mulf %15, %15 : vector<8x32xf32>
    %cst_12 = arith.constant dense<0.000000e+00> : vector<8xf32>
    %17 = vector.multi_reduction <add>, %16, %cst_12 [1] : vector<8x32xf32> to vector<8xf32>
    %18 = vector.shape_cast %17 : vector<8xf32> to vector<8x1xf32>
    %cst_13 = arith.constant 0.0322580636 : f32
    %19 = vector.broadcast %cst_13 : f32 to vector<8x1xf32>
    %20 = arith.mulf %18, %19 : vector<8x1xf32>
    %21 = math.sqrt %20 : vector<8x1xf32>
    %cst_14 = arith.constant 9.99999997E-7 : f32
    %22 = vector.broadcast %cst_14 : f32 to vector<8x1xf32>
    %23 = arith.addf %21, %22 : vector<8x1xf32>
    %24 = vector.broadcast %23 : vector<8x1xf32> to vector<8x32xf32>
    %25 = arith.divf %15, %24 : vector<8x32xf32>
    %26 = vector.broadcast %7 : vector<1x32xf32> to vector<8x32xf32>
    %27 = arith.mulf %26, %25 : vector<8x32xf32>
    %28 = vector.broadcast %9 : vector<1x32xf32> to vector<8x32xf32>
    %29 = arith.addf %27, %28 : vector<8x32xf32>
    %30 = arith.truncf %29 : vector<8x32xf32> to vector<8x32xbf16>
    %c0_15 = arith.constant 0 : index
    %c0_16 = arith.constant 0 : index
    %c0_17 = arith.constant 0 : index
    %31 = vector.load %arg4[%c0_15, %c0_16, %c0_17] : memref<1x32x96xbf16, #tpu.memory_space<vmem>>, vector<1x32x96xbf16>
    %32 = vector.shape_cast %31 : vector<1x32x96xbf16> to vector<32x96xbf16>
    %cst_18 = arith.constant dense<0.000000e+00> : vector<8x96xf32>
    %33 = tpu.matmul %30, %32, %cst_18 {dimension_numbers = #tpu.dot_dimension_numbers<[1], [0], [0], [1], [0, 0, 1, 1], [], []>} : vector<8x32xbf16>, vector<32x96xbf16>, vector<8x96xf32> -> vector<8x96xf32>
    %c0_19 = arith.constant 0 : index
    %c0_20 = arith.constant 0 : index
    %c0_21 = arith.constant 0 : index
    %34 = vector.load %arg5[%c0_19, %c0_20, %c0_21] : memref<1x1x96xf32, #tpu.memory_space<vmem>>, vector<1x1x96xf32>
    %35 = vector.shape_cast %34 : vector<1x1x96xf32> to vector<1x96xf32>
    %36 = vector.broadcast %35 : vector<1x96xf32> to vector<8x96xf32>
    %37 = arith.addf %33, %36 : vector<8x96xf32>
    %38 = vector.extract_strided_slice %37 {offsets = [0, 0], sizes = [8, 8], strides = [1, 1]} : vector<8x96xf32> to vector<8x8xf32>
    %39 = vector.extract_strided_slice %37 {offsets = [0, 8], sizes = [8, 8], strides = [1, 1]} : vector<8x96xf32> to vector<8x8xf32>
    %40 = vector.extract_strided_slice %37 {offsets = [0, 16], sizes = [8, 8], strides = [1, 1]} : vector<8x96xf32> to vector<8x8xf32>
    %41 = vector.extract_strided_slice %37 {offsets = [0, 24], sizes = [8, 8], strides = [1, 1]} : vector<8x96xf32> to vector<8x8xf32>
    %42 = vector.shape_cast %38 : vector<8x8xf32> to vector<1x8x8xf32>
    %43 = vector.shape_cast %39 : vector<8x8xf32> to vector<1x8x8xf32>
    %44 = vector.shape_cast %40 : vector<8x8xf32> to vector<1x8x8xf32>
    %45 = vector.shape_cast %41 : vector<8x8xf32> to vector<1x8x8xf32>
    %46 = tpu.concatenate %42, %43, %44, %45 in 0 : vector<1x8x8xf32>, vector<1x8x8xf32>, vector<1x8x8xf32>, vector<1x8x8xf32> -> vector<4x8x8xf32>
    %47 = arith.truncf %46 : vector<4x8x8xf32> to vector<4x8x8xbf16>
    %48 = vector.extract_strided_slice %37 {offsets = [0, 32], sizes = [8, 8], strides = [1, 1]} : vector<8x96xf32> to vector<8x8xf32>
    %49 = vector.extract_strided_slice %37 {offsets = [0, 40], sizes = [8, 8], strides = [1, 1]} : vector<8x96xf32> to vector<8x8xf32>
    %50 = vector.extract_strided_slice %37 {offsets = [0, 48], sizes = [8, 8], strides = [1, 1]} : vector<8x96xf32> to vector<8x8xf32>
    %51 = vector.extract_strided_slice %37 {offsets = [0, 56], sizes = [8, 8], strides = [1, 1]} : vector<8x96xf32> to vector<8x8xf32>
    %52 = vector.shape_cast %48 : vector<8x8xf32> to vector<1x8x8xf32>
    %53 = vector.shape_cast %49 : vector<8x8xf32> to vector<1x8x8xf32>
    %54 = vector.shape_cast %50 : vector<8x8xf32> to vector<1x8x8xf32>
    %55 = vector.shape_cast %51 : vector<8x8xf32> to vector<1x8x8xf32>
    %56 = tpu.concatenate %52, %53, %54, %55 in 0 : vector<1x8x8xf32>, vector<1x8x8xf32>, vector<1x8x8xf32>, vector<1x8x8xf32> -> vector<4x8x8xf32>
    %57 = arith.truncf %56 : vector<4x8x8xf32> to vector<4x8x8xbf16>
    %58 = vector.extract_strided_slice %37 {offsets = [0, 64], sizes = [8, 8], strides = [1, 1]} : vector<8x96xf32> to vector<8x8xf32>
    %59 = vector.extract_strided_slice %37 {offsets = [0, 72], sizes = [8, 8], strides = [1, 1]} : vector<8x96xf32> to vector<8x8xf32>
    %60 = vector.extract_strided_slice %37 {offsets = [0, 80], sizes = [8, 8], strides = [1, 1]} : vector<8x96xf32> to vector<8x8xf32>
    %61 = vector.extract_strided_slice %37 {offsets = [0, 88], sizes = [8, 8], strides = [1, 1]} : vector<8x96xf32> to vector<8x8xf32>
    %62 = vector.shape_cast %58 : vector<8x8xf32> to vector<1x8x8xf32>
    %63 = vector.shape_cast %59 : vector<8x8xf32> to vector<1x8x8xf32>
    %64 = vector.shape_cast %60 : vector<8x8xf32> to vector<1x8x8xf32>
    %65 = vector.shape_cast %61 : vector<8x8xf32> to vector<1x8x8xf32>
    %66 = tpu.concatenate %62, %63, %64, %65 in 0 : vector<1x8x8xf32>, vector<1x8x8xf32>, vector<1x8x8xf32>, vector<1x8x8xf32> -> vector<4x8x8xf32>
    %67 = arith.truncf %66 : vector<4x8x8xf32> to vector<4x8x8xbf16>
    "tpu.trace_start"() <{level = 10 : i32, message = "hqd,hkd->hqk"}> : () -> ()
    %cst_22 = arith.constant dense<0.000000e+00> : vector<4x8x8xf32>
    %68 = tpu.matmul %47, %57, %cst_22 {dimension_numbers = #tpu.dot_dimension_numbers<[2], [2], [1], [1], [0, 0, 0, 1, 1, 1], [0], [0]>} : vector<4x8x8xbf16>, vector<4x8x8xbf16>, vector<4x8x8xf32> -> vector<4x8x8xf32>
    "tpu.trace_stop"() : () -> ()
    %cst_23 = arith.constant 0.353553385 : f32
    %69 = vector.broadcast %cst_23 : f32 to vector<4x8x8xf32>
    %70 = arith.mulf %68, %69 : vector<4x8x8xf32>
    %71 = vector.shape_cast %5 : vector<1x8xf32> to vector<1x1x8xf32>
    %72 = vector.broadcast %71 : vector<1x1x8xf32> to vector<4x8x8xf32>
    %73 = arith.addf %70, %72 : vector<4x8x8xf32>
    %cst_24 = arith.constant dense<0xFF800000> : vector<4x8xf32>
    %74 = vector.multi_reduction <maximumf>, %73, %cst_24 [2] : vector<4x8x8xf32> to vector<4x8xf32>
    %75 = vector.shape_cast %74 : vector<4x8xf32> to vector<4x8x1xf32>
    %76 = vector.broadcast %75 : vector<4x8x1xf32> to vector<4x8x8xf32>
    %77 = arith.subf %73, %76 : vector<4x8x8xf32>
    %78 = math.exp %77 : vector<4x8x8xf32>
    %cst_25 = arith.constant dense<0.000000e+00> : vector<4x8xf32>
    %79 = vector.multi_reduction <add>, %78, %cst_25 [2] : vector<4x8x8xf32> to vector<4x8xf32>
    %80 = vector.shape_cast %79 : vector<4x8xf32> to vector<4x8x1xf32>
    %81 = tpu.reciprocal %80 {approx = true} : vector<4x8x1xf32> -> vector<4x8x1xf32>
    %82 = vector.broadcast %81 : vector<4x8x1xf32> to vector<4x8x8xf32>
    %83 = arith.mulf %78, %82 : vector<4x8x8xf32>
    %84 = arith.truncf %83 : vector<4x8x8xf32> to vector<4x8x8xbf16>
    "tpu.trace_start"() <{level = 10 : i32, message = "hqk,hkd->hqd"}> : () -> ()
    %cst_26 = arith.constant dense<0.000000e+00> : vector<4x8x8xf32>
    %85 = tpu.matmul %84, %67, %cst_26 {dimension_numbers = #tpu.dot_dimension_numbers<[2], [1], [1], [2], [0, 0, 0, 1, 1, 2], [0], [0]>} : vector<4x8x8xbf16>, vector<4x8x8xbf16>, vector<4x8x8xf32> -> vector<4x8x8xf32>
    "tpu.trace_stop"() : () -> ()
    %86 = vector.extract_strided_slice %85 {offsets = [0, 0, 0], sizes = [1, 8, 8], strides = [1, 1, 1]} : vector<4x8x8xf32> to vector<1x8x8xf32>
    %87 = vector.shape_cast %86 : vector<1x8x8xf32> to vector<8x8xf32>
    %88 = vector.extract_strided_slice %85 {offsets = [1, 0, 0], sizes = [1, 8, 8], strides = [1, 1, 1]} : vector<4x8x8xf32> to vector<1x8x8xf32>
    %89 = vector.shape_cast %88 : vector<1x8x8xf32> to vector<8x8xf32>
    %90 = vector.extract_strided_slice %85 {offsets = [2, 0, 0], sizes = [1, 8, 8], strides = [1, 1, 1]} : vector<4x8x8xf32> to vector<1x8x8xf32>
    %91 = vector.shape_cast %90 : vector<1x8x8xf32> to vector<8x8xf32>
    %92 = vector.extract_strided_slice %85 {offsets = [3, 0, 0], sizes = [1, 8, 8], strides = [1, 1, 1]} : vector<4x8x8xf32> to vector<1x8x8xf32>
    %93 = vector.shape_cast %92 : vector<1x8x8xf32> to vector<8x8xf32>
    %94 = tpu.concatenate %87, %89, %91, %93 in 1 : vector<8x8xf32>, vector<8x8xf32>, vector<8x8xf32>, vector<8x8xf32> -> vector<8x32xf32>
    %95 = arith.truncf %94 : vector<8x32xf32> to vector<8x32xbf16>
    %c0_27 = arith.constant 0 : index
    %c0_28 = arith.constant 0 : index
    %c0_29 = arith.constant 0 : index
    %96 = vector.load %arg6[%c0_27, %c0_28, %c0_29] : memref<1x32x32xbf16, #tpu.memory_space<vmem>>, vector<1x32x32xbf16>
    %97 = vector.shape_cast %96 : vector<1x32x32xbf16> to vector<32x32xbf16>
    %cst_30 = arith.constant dense<0.000000e+00> : vector<8x32xf32>
    %98 = tpu.matmul %95, %97, %cst_30 {dimension_numbers = #tpu.dot_dimension_numbers<[1], [0], [0], [1], [0, 0, 1, 1], [], []>} : vector<8x32xbf16>, vector<32x32xbf16>, vector<8x32xf32> -> vector<8x32xf32>
    %99 = arith.addf %3, %98 : vector<8x32xf32>
    %c0_31 = arith.constant 0 : index
    %c0_32 = arith.constant 0 : index
    %c0_33 = arith.constant 0 : index
    %100 = vector.load %arg7[%c0_31, %c0_32, %c0_33] : memref<1x1x32xf32, #tpu.memory_space<vmem>>, vector<1x1x32xf32>
    %101 = vector.shape_cast %100 : vector<1x1x32xf32> to vector<1x32xf32>
    %102 = vector.broadcast %101 : vector<1x32xf32> to vector<8x32xf32>
    %103 = arith.addf %99, %102 : vector<8x32xf32>
    %c0_34 = arith.constant 0 : index
    %c0_35 = arith.constant 0 : index
    %c0_36 = arith.constant 0 : index
    %104 = vector.load %arg14[%c0_34, %c0_35, %c0_36] : memref<1x1x32xf32, #tpu.memory_space<vmem>>, vector<1x1x32xf32>
    %105 = vector.shape_cast %104 : vector<1x1x32xf32> to vector<1x32xf32>
    %c0_37 = arith.constant 0 : index
    %c0_38 = arith.constant 0 : index
    %c0_39 = arith.constant 0 : index
    %106 = vector.load %arg15[%c0_37, %c0_38, %c0_39] : memref<1x1x32xf32, #tpu.memory_space<vmem>>, vector<1x1x32xf32>
    %107 = vector.shape_cast %106 : vector<1x1x32xf32> to vector<1x32xf32>
    %cst_40 = arith.constant dense<0.000000e+00> : vector<8xf32>
    %108 = vector.multi_reduction <add>, %103, %cst_40 [1] : vector<8x32xf32> to vector<8xf32>
    %109 = vector.shape_cast %108 : vector<8xf32> to vector<8x1xf32>
    %cst_41 = arith.constant 3.200000e+01 : f32
    %110 = vector.broadcast %cst_41 : f32 to vector<8x1xf32>
    %111 = arith.divf %109, %110 : vector<8x1xf32>
    %112 = vector.broadcast %111 : vector<8x1xf32> to vector<8x32xf32>
    %113 = arith.subf %103, %112 : vector<8x32xf32>
    %114 = arith.mulf %113, %113 : vector<8x32xf32>
    %cst_42 = arith.constant dense<0.000000e+00> : vector<8xf32>
    %115 = vector.multi_reduction <add>, %114, %cst_42 [1] : vector<8x32xf32> to vector<8xf32>
    %116 = vector.shape_cast %115 : vector<8xf32> to vector<8x1xf32>
    %cst_43 = arith.constant 0.0322580636 : f32
    %117 = vector.broadcast %cst_43 : f32 to vector<8x1xf32>
    %118 = arith.mulf %116, %117 : vector<8x1xf32>
    %119 = math.sqrt %118 : vector<8x1xf32>
    %cst_44 = arith.constant 9.99999997E-7 : f32
    %120 = vector.broadcast %cst_44 : f32 to vector<8x1xf32>
    %121 = arith.addf %119, %120 : vector<8x1xf32>
    %122 = vector.broadcast %121 : vector<8x1xf32> to vector<8x32xf32>
    %123 = arith.divf %113, %122 : vector<8x32xf32>
    %124 = vector.broadcast %105 : vector<1x32xf32> to vector<8x32xf32>
    %125 = arith.mulf %124, %123 : vector<8x32xf32>
    %126 = vector.broadcast %107 : vector<1x32xf32> to vector<8x32xf32>
    %127 = arith.addf %125, %126 : vector<8x32xf32>
    %128 = arith.truncf %127 : vector<8x32xf32> to vector<8x32xbf16>
    %c0_45 = arith.constant 0 : index
    %c0_46 = arith.constant 0 : index
    %c0_47 = arith.constant 0 : index
    %129 = vector.load %arg10[%c0_45, %c0_46, %c0_47] : memref<1x32x128xbf16, #tpu.memory_space<vmem>>, vector<1x32x128xbf16>
    %130 = vector.shape_cast %129 : vector<1x32x128xbf16> to vector<32x128xbf16>
    %cst_48 = arith.constant dense<0.000000e+00> : vector<8x128xf32>
    %131 = tpu.matmul %128, %130, %cst_48 {dimension_numbers = #tpu.dot_dimension_numbers<[1], [0], [0], [1], [0, 0, 1, 1], [], []>} : vector<8x32xbf16>, vector<32x128xbf16>, vector<8x128xf32> -> vector<8x128xf32>
    %c0_49 = arith.constant 0 : index
    %c0_50 = arith.constant 0 : index
    %c0_51 = arith.constant 0 : index
    %132 = vector.load %arg11[%c0_49, %c0_50, %c0_51] : memref<1x1x128xf32, #tpu.memory_space<vmem>>, vector<1x1x128xf32>
    %133 = vector.shape_cast %132 : vector<1x1x128xf32> to vector<1x128xf32>
    %134 = vector.broadcast %133 : vector<1x128xf32> to vector<8x128xf32>
    %135 = arith.addf %131, %134 : vector<8x128xf32>
    %cst_52 = arith.constant 5.000000e-01 : f32
    %136 = vector.broadcast %cst_52 : f32 to vector<8x128xf32>
    %137 = arith.mulf %136, %135 : vector<8x128xf32>
    %cst_53 = arith.constant 4.471500e-02 : f32
    %138 = vector.broadcast %cst_53 : f32 to vector<8x128xf32>
    %139 = arith.mulf %138, %135 : vector<8x128xf32>
    %140 = arith.mulf %139, %135 : vector<8x128xf32>
    %141 = arith.mulf %140, %135 : vector<8x128xf32>
    %142 = arith.addf %135, %141 : vector<8x128xf32>
    %cst_54 = arith.constant 0.797884583 : f32
    %143 = vector.broadcast %cst_54 : f32 to vector<8x128xf32>
    %144 = arith.mulf %143, %142 : vector<8x128xf32>
    %145 = math.tanh %144 : vector<8x128xf32>
    %cst_55 = arith.constant 1.000000e+00 : f32
    %146 = vector.broadcast %cst_55 : f32 to vector<8x128xf32>
    %147 = arith.addf %146, %145 : vector<8x128xf32>
    %148 = arith.mulf %137, %147 : vector<8x128xf32>
    %149 = arith.truncf %148 : vector<8x128xf32> to vector<8x128xbf16>
    %c0_56 = arith.constant 0 : index
    %c0_57 = arith.constant 0 : index
    %c0_58 = arith.constant 0 : index
    %150 = vector.load %arg12[%c0_56, %c0_57, %c0_58] : memref<1x128x32xbf16, #tpu.memory_space<vmem>>, vector<1x128x32xbf16>
    %151 = vector.shape_cast %150 : vector<1x128x32xbf16> to vector<128x32xbf16>
    %cst_59 = arith.constant dense<0.000000e+00> : vector<8x32xf32>
    %152 = tpu.matmul %149, %151, %cst_59 {dimension_numbers = #tpu.dot_dimension_numbers<[1], [0], [0], [1], [0, 0, 1, 1], [], []>} : vector<8x128xbf16>, vector<128x32xbf16>, vector<8x32xf32> -> vector<8x32xf32>
    %153 = arith.addf %103, %152 : vector<8x32xf32>
    %c0_60 = arith.constant 0 : index
    %c0_61 = arith.constant 0 : index
    %c0_62 = arith.constant 0 : index
    %154 = vector.load %arg13[%c0_60, %c0_61, %c0_62] : memref<1x1x32xf32, #tpu.memory_space<vmem>>, vector<1x1x32xf32>
    %155 = vector.shape_cast %154 : vector<1x1x32xf32> to vector<1x32xf32>
    %156 = vector.broadcast %155 : vector<1x32xf32> to vector<8x32xf32>
    %157 = arith.addf %153, %156 : vector<8x32xf32>
    %c0_63 = arith.constant 0 : index
    %c0_64 = arith.constant 0 : index
    %158 = vector.load %arg19[%c0_63, %c0_64] : memref<8x32xf32, #tpu.memory_space<vmem>>, vector<8x32xf32>
    tpu.vector_store %arg19[%c0_63, %c0_64], %157 {strides = array<i32>} : memref<8x32xf32, #tpu.memory_space<vmem>>, vector<8x32xf32>,
    %c1_i32 = arith.constant 1 : i32
    %159 = arith.cmpi eq, %arg1, %c1_i32 : i32
    %160 = arith.extui %159 : i1 to i32
    %c0_i32_65 = arith.constant 0 : i32
    %161 = arith.cmpi ne, %160, %c0_i32_65 : i32
    scf.if %161 {
      %162 = arith.truncf %157 : vector<8x32xf32> to vector<8x32xbf16>
      %c0_66 = arith.constant 0 : index
      %c0_67 = arith.constant 0 : index
      %163 = vector.load %arg16[%c0_66, %c0_67] : memref<32x128xbf16, #tpu.memory_space<vmem>>, vector<32x128xbf16>
      %cst_68 = arith.constant dense<0.000000e+00> : vector<8x128xf32>
      %164 = tpu.matmul %162, %163, %cst_68 {dimension_numbers = #tpu.dot_dimension_numbers<[1], [0], [0], [1], [0, 0, 1, 1], [], []>} : vector<8x32xbf16>, vector<32x128xbf16>, vector<8x128xf32> -> vector<8x128xf32>
      %c0_69 = arith.constant 0 : index
      %c0_70 = arith.constant 0 : index
      %165 = vector.load %arg17[%c0_69, %c0_70] : memref<1x128xf32, #tpu.memory_space<vmem>>, vector<1x128xf32>
      %166 = vector.broadcast %165 : vector<1x128xf32> to vector<8x128xf32>
      %167 = arith.addf %164, %166 : vector<8x128xf32>
      %c0_71 = arith.constant 0 : index
      %c0_72 = arith.constant 0 : index
      %c0_73 = arith.constant 0 : index
      %168 = vector.load %arg18[%c0_71, %c0_72, %c0_73] : memref<1x8x128xf32, #tpu.memory_space<vmem>>, vector<1x8x128xf32>
      %169 = vector.shape_cast %168 : vector<1x8x128xf32> to vector<8x128xf32>
      %170 = vector.shape_cast %167 : vector<8x128xf32> to vector<1x8x128xf32>
      tpu.vector_store %arg18[%c0_71, %c0_72, %c0_73], %170 {strides = array<i32>} : memref<1x8x128xf32, #tpu.memory_space<vmem>>, vector<1x8x128xf32>,
    } else {
    }
    return
  }
  func.func @transform_0(%arg0: i32, %arg1: i32) -> (i32, i32, i32) {
    %c0_i32 = arith.constant 0 : i32
    %c0_i32_0 = arith.constant 0 : i32
    %c0_i32_1 = arith.constant 0 : i32
    return %arg0, %c0_i32, %c0_i32_0 : i32, i32, i32
  }
  func.func @transform_1(%arg0: i32, %arg1: i32) -> (i32, i32, i32) {
    %c0_i32 = arith.constant 0 : i32
    %c0_i32_0 = arith.constant 0 : i32
    %c0_i32_1 = arith.constant 0 : i32
    return %arg0, %c0_i32, %c0_i32_0 : i32, i32, i32
  }
  func.func @transform_2(%arg0: i32, %arg1: i32) -> (i32, i32, i32) {
    %c0_i32 = arith.constant 0 : i32
    %c0_i32_0 = arith.constant 0 : i32
    %c0_i32_1 = arith.constant 0 : i32
    return %arg1, %c0_i32, %c0_i32_0 : i32, i32, i32
  }
  func.func @transform_3(%arg0: i32, %arg1: i32) -> (i32, i32, i32) {
    %c0_i32 = arith.constant 0 : i32
    %c0_i32_0 = arith.constant 0 : i32
    %c0_i32_1 = arith.constant 0 : i32
    return %arg1, %c0_i32, %c0_i32_0 : i32, i32, i32
  }
  func.func @transform_4(%arg0: i32, %arg1: i32) -> (i32, i32, i32) {
    %c0_i32 = arith.constant 0 : i32
    %c0_i32_0 = arith.constant 0 : i32
    %c0_i32_1 = arith.constant 0 : i32
    return %arg1, %c0_i32, %c0_i32_0 : i32, i32, i32
  }
  func.func @transform_5(%arg0: i32, %arg1: i32) -> (i32, i32, i32) {
    %c0_i32 = arith.constant 0 : i32
    %c0_i32_0 = arith.constant 0 : i32
    %c0_i32_1 = arith.constant 0 : i32
    return %arg1, %c0_i32, %c0_i32_0 : i32, i32, i32
  }
  func.func @transform_6(%arg0: i32, %arg1: i32) -> (i32, i32, i32) {
    %c0_i32 = arith.constant 0 : i32
    %c0_i32_0 = arith.constant 0 : i32
    %c0_i32_1 = arith.constant 0 : i32
    return %arg1, %c0_i32, %c0_i32_0 : i32, i32, i32
  }
  func.func @transform_7(%arg0: i32, %arg1: i32) -> (i32, i32, i32) {
    %c0_i32 = arith.constant 0 : i32
    %c0_i32_0 = arith.constant 0 : i32
    %c0_i32_1 = arith.constant 0 : i32
    return %arg1, %c0_i32, %c0_i32_0 : i32, i32, i32
  }
  func.func @transform_8(%arg0: i32, %arg1: i32) -> (i32, i32, i32) {
    %c0_i32 = arith.constant 0 : i32
    %c0_i32_0 = arith.constant 0 : i32
    %c0_i32_1 = arith.constant 0 : i32
    return %arg1, %c0_i32, %c0_i32_0 : i32, i32, i32
  }
  func.func @transform_9(%arg0: i32, %arg1: i32) -> (i32, i32, i32) {
    %c0_i32 = arith.constant 0 : i32
    %c0_i32_0 = arith.constant 0 : i32
    %c0_i32_1 = arith.constant 0 : i32
    return %arg1, %c0_i32, %c0_i32_0 : i32, i32, i32
  }
  func.func @transform_10(%arg0: i32, %arg1: i32) -> (i32, i32, i32) {
    %c0_i32 = arith.constant 0 : i32
    %c0_i32_0 = arith.constant 0 : i32
    %c0_i32_1 = arith.constant 0 : i32
    return %arg1, %c0_i32, %c0_i32_0 : i32, i32, i32
  }
  func.func @transform_11(%arg0: i32, %arg1: i32) -> (i32, i32, i32) {
    %c0_i32 = arith.constant 0 : i32
    %c0_i32_0 = arith.constant 0 : i32
    %c0_i32_1 = arith.constant 0 : i32
    return %arg1, %c0_i32, %c0_i32_0 : i32, i32, i32
  }
  func.func @transform_12(%arg0: i32, %arg1: i32) -> (i32, i32, i32) {
    %c0_i32 = arith.constant 0 : i32
    %c0_i32_0 = arith.constant 0 : i32
    %c0_i32_1 = arith.constant 0 : i32
    return %arg1, %c0_i32, %c0_i32_0 : i32, i32, i32
  }
  func.func @transform_13(%arg0: i32, %arg1: i32) -> (i32, i32, i32) {
    %c0_i32 = arith.constant 0 : i32
    %c0_i32_0 = arith.constant 0 : i32
    %c0_i32_1 = arith.constant 0 : i32
    return %arg1, %c0_i32, %c0_i32_0 : i32, i32, i32
  }
  func.func @transform_14(%arg0: i32, %arg1: i32) -> (i32, i32) {
    %c0_i32 = arith.constant 0 : i32
    %c0_i32_0 = arith.constant 0 : i32
    %c0_i32_1 = arith.constant 0 : i32
    return %c0_i32, %c0_i32_0 : i32, i32
  }
  func.func @transform_15(%arg0: i32, %arg1: i32) -> (i32, i32) {
    %c0_i32 = arith.constant 0 : i32
    %c0_i32_0 = arith.constant 0 : i32
    %c0_i32_1 = arith.constant 0 : i32
    return %c0_i32, %c0_i32_0 : i32, i32
  }
  func.func @transform_16(%arg0: i32, %arg1: i32) -> (i32, i32, i32) {
    %c0_i32 = arith.constant 0 : i32
    %c0_i32_0 = arith.constant 0 : i32
    %c0_i32_1 = arith.constant 0 : i32
    return %arg0, %c0_i32, %c0_i32_0 : i32, i32, i32
  }
}

</mosaic_0001>

<llo_original>
// kernel: tpu_custom_call.1
$region0: #{tpu_custom_call.1}
  #allocation0 [shape = 'u32[]', space=smem, size = 0x4, offset = 0x4, fixed_abs, tag = 'smem constant byte address 0x4 - core index']
  #allocation1 [shape = 'u32[72,128]{1,0:T(1,128)}', space=vmem, size = 0x9000, scoped, tag = 'internal scratch']
  #allocation2 [shape = 'f32[8,32]{1,0:T(8,128)}', space=vmem, size = 0x1000, scoped, tag = 'scratch operand']
  %s0 = inlined_call_operand.vmem [shape: f32[2,8,32], index: 0, kind: input, shape index: {}]
  %s1 = inlined_call_operand.vmem [shape: f32[2,1,8], index: 1, kind: input, shape index: {}]
  %s2 = inlined_call_operand.vmem [shape: bf16[2,32,96], index: 2, kind: input, shape index: {}]
  %s3 = inlined_call_operand.vmem [shape: f32[2,1,96], index: 3, kind: input, shape index: {}]
  %s4 = inlined_call_operand.vmem [shape: bf16[2,32,32], index: 4, kind: input, shape index: {}]
  %s5 = inlined_call_operand.vmem [shape: f32[2,1,32], index: 5, kind: input, shape index: {}]
  %s6 = inlined_call_operand.vmem [shape: f32[2,1,32], index: 6, kind: input, shape index: {}]
  %s7 = inlined_call_operand.vmem [shape: f32[2,1,32], index: 7, kind: input, shape index: {}]
  %s8 = inlined_call_operand.vmem [shape: bf16[2,32,128], index: 8, kind: input, shape index: {}]
  %s9 = inlined_call_operand.vmem [shape: f32[2,1,128], index: 9, kind: input, shape index: {}]
  %s10 = inlined_call_operand.vmem [shape: bf16[2,128,32], index: 10, kind: input, shape index: {}]
  %s11 = inlined_call_operand.vmem [shape: f32[2,1,32], index: 11, kind: input, shape index: {}]
  %s12 = inlined_call_operand.vmem [shape: f32[2,1,32], index: 12, kind: input, shape index: {}]
  %s13 = inlined_call_operand.vmem [shape: f32[2,1,32], index: 13, kind: input, shape index: {}]
  %s14 = inlined_call_operand.vmem [shape: bf16[32,128], index: 14, kind: input, shape index: {}]
  %s15 = inlined_call_operand.vmem [shape: f32[1,128], index: 15, kind: input, shape index: {}]
  %s16 = inlined_call_operand.hbm [shape: f32[2,8,128], index: 16, kind: output, shape index: {}]
  %s17 = sld [smem:[#allocation0]]
  $region105: #{tpu_custom_call.1} parent=0
    _
  %s19 = ssub.s32 1, %s17
  %s20 = scalar_select 0, %s19, %s17
  $region1: #{tpu_custom_call.1} parent=0
    #allocation3 [shape = 'u8[8192]{0}', space=vmem, size = 0x2000, scoped, tag = 'output window, operand 0']
    #allocation4 [shape = 's32[2]{0}', space=sflag, size = 0x8, scoped, tag = 'scoped memory for tpu_custom_call.1']
    %21 = vsyncpa [#allocation4], 0
    %s22 = scalar_lea.sflag [#allocation4], 1
    %23 = vsyncpa %s22, 0
    loop: start=0, step=1, limit=6
    $region2: #{tpu_custom_call.1} parent=1 // loop_pre_header
      _
    $region3: #{tpu_custom_call.1} parent=1 // loop_header
      %s25 = sphi 0, %s29
      %p26 = scmp.ge.s32.totalorder %s25, 6
      %s32 = sphi 0, %s44
      %s33 = sphi 0, %s40
      %s34 = sphi 0, %s32
      %s35 = sphi 0, %s33
      %s36 = sphi 0, %s34
      %s37 = sphi 0, %s35
      %s47 = sphi 0, %s49
      %s50 = sphi 0, %s47
      %s51 = sphi 0, %s50
      %s67 = sphi 0, %s51
      %s73 = sphi 0, %s75
      %s76 = sphi 0, %s73
      %s77 = sphi 0, %s76
      %s93 = sphi 0, %s77
      %s99 = sphi 0, %s101
      %s102 = sphi 0, %s99
      %s103 = sphi 0, %s102
      %s119 = sphi 0, %s103
      %s125 = sphi 0, %s127
      %s128 = sphi 0, %s125
      %s129 = sphi 0, %s128
      %s145 = sphi 0, %s129
      %s151 = sphi 0, %s153
      %s154 = sphi 0, %s151
      %s155 = sphi 0, %s154
      %s171 = sphi 0, %s155
      %s177 = sphi 0, %s179
      %s180 = sphi 0, %s177
      %s181 = sphi 0, %s180
      %s197 = sphi 0, %s181
      %s203 = sphi 0, %s205
      %s206 = sphi 0, %s203
      %s207 = sphi 0, %s206
      %s223 = sphi 0, %s207
      %s229 = sphi 0, %s231
      %s232 = sphi 0, %s229
      %s233 = sphi 0, %s232
      %s249 = sphi 0, %s233
      %s255 = sphi 0, %s257
      %s258 = sphi 0, %s255
      %s259 = sphi 0, %s258
      %s275 = sphi 0, %s259
      %s281 = sphi 0, %s283
      %s284 = sphi 0, %s281
      %s285 = sphi 0, %s284
      %s301 = sphi 0, %s285
      %s307 = sphi 0, %s309
      %s310 = sphi 0, %s307
      %s311 = sphi 0, %s310
      %s327 = sphi 0, %s311
      %s333 = sphi 0, %s335
      %s336 = sphi 0, %s333
      %s337 = sphi 0, %s336
      %s353 = sphi 0, %s337
      %s359 = sphi 0, %s361
      %s362 = sphi 0, %s359
      %s363 = sphi 0, %s362
      %s379 = sphi 0, %s363
      %s385 = sphi 0, %s387
      %s388 = sphi 0, %s385
      %s389 = sphi 0, %s388
      %s405 = sphi 0, %s389
      %s409 = sphi 0, %s409
      %s411 = sphi 0, %s409
      %s412 = sphi 0, %s411
      %s426 = sphi 0, %s412
      %s430 = sphi 0, %s430
      %s432 = sphi 0, %s430
      %s433 = sphi 0, %s432
      %s447 = sphi 0, %s433
      %s453 = sphi 0, %s455
      %s456 = sphi 0, %s453
      %s457 = sphi 0, %s456
      %s473 = sphi 0, %s457
    $region4: #{tpu_custom_call.1} parent=1 // loop_header_branch
      %28 = sbr.rel (%p26) target = $region8
    $region5: #{tpu_custom_call.1} parent=1 // loop_body
      %s30 = ssub.s32 %s25, 1
      %s31 = ssub.s32 %s25, 2
      %s38 = sadd.s32 1, %s33
      %p39 = scmp.ge.s32.totalorder %s38, 2
      %s40 = scalar_select %p39, 0, %s38
      %s41 = sadd.s32 1, %s32
      %s42 = scalar_select %p39, %s41, %s32
      %p43 = scmp.ge.s32.totalorder %s42, 2
      %s44 = scalar_select %p43, 0, %s42
      %s45 = ssub.s32 %s32, %s44
      %p46 = scmp.eq.s32.totalorder %s45, 0
      %s48 = sadd.s32 %s47, 1
      %s49 = scalar_select %p46, %s47, %s48
      %p52 = pneg %p46
      %p53 = scmp.eq.s32.totalorder %s25, 3
      %p54 = por %p52, %p53
      %p55 = scmp.ne.s32.totalorder %s47, %s50
      %p56 = scmp.eq.s32.totalorder %s25, 0
      %p57 = por %p55, %p56
      %p58 = scmp.ne.s32.totalorder %s47, %s50
      %p59 = scmp.eq.s32.totalorder %s30, 3
      %p60 = por %p58, %p59
      %p61 = scmp.ne.s32.totalorder %s50, %s51
      %p62 = scmp.eq.s32.totalorder %s30, 0
      %p63 = por %p61, %p62
      %p64 = scmp.ne.s32.totalorder %s50, %s51
      %p65 = scmp.eq.s32.totalorder %s31, 3
      %p66 = por %p64, %p65
      %p68 = scmp.ne.s32.totalorder %s51, %s67
      %p69 = scmp.eq.s32.totalorder %s31, 0
      %p70 = por %p68, %p69
      %s71 = ssub.s32 %s32, %s44
      %p72 = scmp.eq.s32.totalorder %s71, 0
      %s74 = sadd.s32 %s73, 1
      %s75 = scalar_select %p72, %s73, %s74
      %p78 = pneg %p72
      %p79 = scmp.eq.s32.totalorder %s25, 3
      %p80 = por %p78, %p79
      %p81 = scmp.ne.s32.totalorder %s73, %s76
      %p82 = scmp.eq.s32.totalorder %s25, 0
      %p83 = por %p81, %p82
      %p84 = scmp.ne.s32.totalorder %s73, %s76
      %p85 = scmp.eq.s32.totalorder %s30, 3
      %p86 = por %p84, %p85
      %p87 = scmp.ne.s32.totalorder %s76, %s77
      %p88 = scmp.eq.s32.totalorder %s30, 0
      %p89 = por %p87, %p88
      %p90 = scmp.ne.s32.totalorder %s76, %s77
      %p91 = scmp.eq.s32.totalorder %s31, 3
      %p92 = por %p90, %p91
      %p94 = scmp.ne.s32.totalorder %s77, %s93
      %p95 = scmp.eq.s32.totalorder %s31, 0
      %p96 = por %p94, %p95
      %s97 = ssub.s32 %s33, %s40
      %p98 = scmp.eq.s32.totalorder %s97, 0
      %s100 = sadd.s32 %s99, 1
      %s101 = scalar_select %p98, %s99, %s100
      %p104 = pneg %p98
      %p105 = scmp.eq.s32.totalorder %s25, 3
      %p106 = por %p104, %p105
      %p107 = scmp.ne.s32.totalorder %s99, %s102
      %p108 = scmp.eq.s32.totalorder %s25, 0
      %p109 = por %p107, %p108
      %p110 = scmp.ne.s32.totalorder %s99, %s102
      %p111 = scmp.eq.s32.totalorder %s30, 3
      %p112 = por %p110, %p111
      %p113 = scmp.ne.s32.totalorder %s102, %s103
      %p114 = scmp.eq.s32.totalorder %s30, 0
      %p115 = por %p113, %p114
      %p116 = scmp.ne.s32.totalorder %s102, %s103
      %p117 = scmp.eq.s32.totalorder %s31, 3
      %p118 = por %p116, %p117
      %p120 = scmp.ne.s32.totalorder %s103, %s119
      %p121 = scmp.eq.s32.totalorder %s31, 0
      %p122 = por %p120, %p121
      %s123 = ssub.s32 %s33, %s40
      %p124 = scmp.eq.s32.totalorder %s123, 0
      %s126 = sadd.s32 %s125, 1
      %s127 = scalar_select %p124, %s125, %s126
      %p130 = pneg %p124
      %p131 = scmp.eq.s32.totalorder %s25, 3
      %p132 = por %p130, %p131
      %p133 = scmp.ne.s32.totalorder %s125, %s128
      %p134 = scmp.eq.s32.totalorder %s25, 0
      %p135 = por %p133, %p134
      %p136 = scmp.ne.s32.totalorder %s125, %s128
      %p137 = scmp.eq.s32.totalorder %s30, 3
      %p138 = por %p136, %p137
      %p139 = scmp.ne.s32.totalorder %s128, %s129
      %p140 = scmp.eq.s32.totalorder %s30, 0
      %p141 = por %p139, %p140
      %p142 = scmp.ne.s32.totalorder %s128, %s129
      %p143 = scmp.eq.s32.totalorder %s31, 3
      %p144 = por %p142, %p143
      %p146 = scmp.ne.s32.totalorder %s129, %s145
      %p147 = scmp.eq.s32.totalorder %s31, 0
      %p148 = por %p146, %p147
      %s149 = ssub.s32 %s33, %s40
      %p150 = scmp.eq.s32.totalorder %s149, 0
      %s152 = sadd.s32 %s151, 1
      %s153 = scalar_select %p150, %s151, %s152
      %p156 = pneg %p150
      %p157 = scmp.eq.s32.totalorder %s25, 3
      %p158 = por %p156, %p157
      %p159 = scmp.ne.s32.totalorder %s151, %s154
      %p160 = scmp.eq.s32.totalorder %s25, 0
      %p161 = por %p159, %p160
      %p162 = scmp.ne.s32.totalorder %s151, %s154
      %p163 = scmp.eq.s32.totalorder %s30, 3
      %p164 = por %p162, %p163
      %p165 = scmp.ne.s32.totalorder %s154, %s155
      %p166 = scmp.eq.s32.totalorder %s30, 0
      %p167 = por %p165, %p166
      %p168 = scmp.ne.s32.totalorder %s154, %s155
      %p169 = scmp.eq.s32.totalorder %s31, 3
      %p170 = por %p168, %p169
      %p172 = scmp.ne.s32.totalorder %s155, %s171
      %p173 = scmp.eq.s32.totalorder %s31, 0
      %p174 = por %p172, %p173
      %s175 = ssub.s32 %s33, %s40
      %p176 = scmp.eq.s32.totalorder %s175, 0
      %s178 = sadd.s32 %s177, 1
      %s179 = scalar_select %p176, %s177, %s178
      %p182 = pneg %p176
      %p183 = scmp.eq.s32.totalorder %s25, 3
      %p184 = por %p182, %p183
      %p185 = scmp.ne.s32.totalorder %s177, %s180
      %p186 = scmp.eq.s32.totalorder %s25, 0
      %p187 = por %p185, %p186
      %p188 = scmp.ne.s32.totalorder %s177, %s180
      %p189 = scmp.eq.s32.totalorder %s30, 3
      %p190 = por %p188, %p189
      %p191 = scmp.ne.s32.totalorder %s180, %s181
      %p192 = scmp.eq.s32.totalorder %s30, 0
      %p193 = por %p191, %p192
      %p194 = scmp.ne.s32.totalorder %s180, %s181
      %p195 = scmp.eq.s32.totalorder %s31, 3
      %p196 = por %p194, %p195
      %p198 = scmp.ne.s32.totalorder %s181, %s197
      %p199 = scmp.eq.s32.totalorder %s31, 0
      %p200 = por %p198, %p199
      %s201 = ssub.s32 %s33, %s40
      %p202 = scmp.eq.s32.totalorder %s201, 0
      %s204 = sadd.s32 %s203, 1
      %s205 = scalar_select %p202, %s203, %s204
      %p208 = pneg %p202
      %p209 = scmp.eq.s32.totalorder %s25, 3
      %p210 = por %p208, %p209
      %p211 = scmp.ne.s32.totalorder %s203, %s206
      %p212 = scmp.eq.s32.totalorder %s25, 0
      %p213 = por %p211, %p212
      %p214 = scmp.ne.s32.totalorder %s203, %s206
      %p215 = scmp.eq.s32.totalorder %s30, 3
      %p216 = por %p214, %p215
      %p217 = scmp.ne.s32.totalorder %s206, %s207
      %p218 = scmp.eq.s32.totalorder %s30, 0
      %p219 = por %p217, %p218
      %p220 = scmp.ne.s32.totalorder %s206, %s207
      %p221 = scmp.eq.s32.totalorder %s31, 3
      %p222 = por %p220, %p221
      %p224 = scmp.ne.s32.totalorder %s207, %s223
      %p225 = scmp.eq.s32.totalorder %s31, 0
      %p226 = por %p224, %p225
      %s227 = ssub.s32 %s33, %s40
      %p228 = scmp.eq.s32.totalorder %s227, 0
      %s230 = sadd.s32 %s229, 1
      %s231 = scalar_select %p228, %s229, %s230
      %p234 = pneg %p228
      %p235 = scmp.eq.s32.totalorder %s25, 3
      %p236 = por %p234, %p235
      %p237 = scmp.ne.s32.totalorder %s229, %s232
      %p238 = scmp.eq.s32.totalorder %s25, 0
      %p239 = por %p237, %p238
      %p240 = scmp.ne.s32.totalorder %s229, %s232
      %p241 = scmp.eq.s32.totalorder %s30, 3
      %p242 = por %p240, %p241
      %p243 = scmp.ne.s32.totalorder %s232, %s233
      %p244 = scmp.eq.s32.totalorder %s30, 0
      %p245 = por %p243, %p244
      %p246 = scmp.ne.s32.totalorder %s232, %s233
      %p247 = scmp.eq.s32.totalorder %s31, 3
      %p248 = por %p246, %p247
      %p250 = scmp.ne.s32.totalorder %s233, %s249
      %p251 = scmp.eq.s32.totalorder %s31, 0
      %p252 = por %p250, %p251
      %s253 = ssub.s32 %s33, %s40
      %p254 = scmp.eq.s32.totalorder %s253, 0
      %s256 = sadd.s32 %s255, 1
      %s257 = scalar_select %p254, %s255, %s256
      %p260 = pneg %p254
      %p261 = scmp.eq.s32.totalorder %s25, 3
      %p262 = por %p260, %p261
      %p263 = scmp.ne.s32.totalorder %s255, %s258
      %p264 = scmp.eq.s32.totalorder %s25, 0
      %p265 = por %p263, %p264
      %p266 = scmp.ne.s32.totalorder %s255, %s258
      %p267 = scmp.eq.s32.totalorder %s30, 3
      %p268 = por %p266, %p267
      %p269 = scmp.ne.s32.totalorder %s258, %s259
      %p270 = scmp.eq.s32.totalorder %s30, 0
      %p271 = por %p269, %p270
      %p272 = scmp.ne.s32.totalorder %s258, %s259
      %p273 = scmp.eq.s32.totalorder %s31, 3
      %p274 = por %p272, %p273
      %p276 = scmp.ne.s32.totalorder %s259, %s275
      %p277 = scmp.eq.s32.totalorder %s31, 0
      %p278 = por %p276, %p277
      %s279 = ssub.s32 %s33, %s40
      %p280 = scmp.eq.s32.totalorder %s279, 0
      %s282 = sadd.s32 %s281, 1
      %s283 = scalar_select %p280, %s281, %s282
      %p286 = pneg %p280
      %p287 = scmp.eq.s32.totalorder %s25, 3
      %p288 = por %p286, %p287
      %p289 = scmp.ne.s32.totalorder %s281, %s284
      %p290 = scmp.eq.s32.totalorder %s25, 0
      %p291 = por %p289, %p290
      %p292 = scmp.ne.s32.totalorder %s281, %s284
      %p293 = scmp.eq.s32.totalorder %s30, 3
      %p294 = por %p292, %p293
      %p295 = scmp.ne.s32.totalorder %s284, %s285
      %p296 = scmp.eq.s32.totalorder %s30, 0
      %p297 = por %p295, %p296
      %p298 = scmp.ne.s32.totalorder %s284, %s285
      %p299 = scmp.eq.s32.totalorder %s31, 3
      %p300 = por %p298, %p299
      %p302 = scmp.ne.s32.totalorder %s285, %s301
      %p303 = scmp.eq.s32.totalorder %s31, 0
      %p304 = por %p302, %p303
      %s305 = ssub.s32 %s33, %s40
      %p306 = scmp.eq.s32.totalorder %s305, 0
      %s308 = sadd.s32 %s307, 1
      %s309 = scalar_select %p306, %s307, %s308
      %p312 = pneg %p306
      %p313 = scmp.eq.s32.totalorder %s25, 3
      %p314 = por %p312, %p313
      %p315 = scmp.ne.s32.totalorder %s307, %s310
      %p316 = scmp.eq.s32.totalorder %s25, 0
      %p317 = por %p315, %p316
      %p318 = scmp.ne.s32.totalorder %s307, %s310
      %p319 = scmp.eq.s32.totalorder %s30, 3
      %p320 = por %p318, %p319
      %p321 = scmp.ne.s32.totalorder %s310, %s311
      %p322 = scmp.eq.s32.totalorder %s30, 0
      %p323 = por %p321, %p322
      %p324 = scmp.ne.s32.totalorder %s310, %s311
      %p325 = scmp.eq.s32.totalorder %s31, 3
      %p326 = por %p324, %p325
      %p328 = scmp.ne.s32.totalorder %s311, %s327
      %p329 = scmp.eq.s32.totalorder %s31, 0
      %p330 = por %p328, %p329
      %s331 = ssub.s32 %s33, %s40
      %p332 = scmp.eq.s32.totalorder %s331, 0
      %s334 = sadd.s32 %s333, 1
      %s335 = scalar_select %p332, %s333, %s334
      %p338 = pneg %p332
      %p339 = scmp.eq.s32.totalorder %s25, 3
      %p340 = por %p338, %p339
      %p341 = scmp.ne.s32.totalorder %s333, %s336
      %p342 = scmp.eq.s32.totalorder %s25, 0
      %p343 = por %p341, %p342
      %p344 = scmp.ne.s32.totalorder %s333, %s336
      %p345 = scmp.eq.s32.totalorder %s30, 3
      %p346 = por %p344, %p345
      %p347 = scmp.ne.s32.totalorder %s336, %s337
      %p348 = scmp.eq.s32.totalorder %s30, 0
      %p349 = por %p347, %p348
      %p350 = scmp.ne.s32.totalorder %s336, %s337
      %p351 = scmp.eq.s32.totalorder %s31, 3
      %p352 = por %p350, %p351
      %p354 = scmp.ne.s32.totalorder %s337, %s353
      %p355 = scmp.eq.s32.totalorder %s31, 0
      %p356 = por %p354, %p355
      %s357 = ssub.s32 %s33, %s40
      %p358 = scmp.eq.s32.totalorder %s357, 0
      %s360 = sadd.s32 %s359, 1
      %s361 = scalar_select %p358, %s359, %s360
      %p364 = pneg %p358
      %p365 = scmp.eq.s32.totalorder %s25, 3
      %p366 = por %p364, %p365
      %p367 = scmp.ne.s32.totalorder %s359, %s362
      %p368 = scmp.eq.s32.totalorder %s25, 0
      %p369 = por %p367, %p368
      %p370 = scmp.ne.s32.totalorder %s359, %s362
      %p371 = scmp.eq.s32.totalorder %s30, 3
      %p372 = por %p370, %p371
      %p373 = scmp.ne.s32.totalorder %s362, %s363
      %p374 = scmp.eq.s32.totalorder %s30, 0
      %p375 = por %p373, %p374
      %p376 = scmp.ne.s32.totalorder %s362, %s363
      %p377 = scmp.eq.s32.totalorder %s31, 3
      %p378 = por %p376, %p377
      %p380 = scmp.ne.s32.totalorder %s363, %s379
      %p381 = scmp.eq.s32.totalorder %s31, 0
      %p382 = por %p380, %p381
      %s383 = ssub.s32 %s33, %s40
      %p384 = scmp.eq.s32.totalorder %s383, 0
      %s386 = sadd.s32 %s385, 1
      %s387 = scalar_select %p384, %s385, %s386
      %p390 = pneg %p384
      %p391 = scmp.eq.s32.totalorder %s25, 3
      %p392 = por %p390, %p391
      %p393 = scmp.ne.s32.totalorder %s385, %s388
      %p394 = scmp.eq.s32.totalorder %s25, 0
      %p395 = por %p393, %p394
      %p396 = scmp.ne.s32.totalorder %s385, %s388
      %p397 = scmp.eq.s32.totalorder %s30, 3
      %p398 = por %p396, %p397
      %p399 = scmp.ne.s32.totalorder %s388, %s389
      %p400 = scmp.eq.s32.totalorder %s30, 0
      %p401 = por %p399, %p400
      %p402 = scmp.ne.s32.totalorder %s388, %s389
      %p403 = scmp.eq.s32.totalorder %s31, 3
      %p404 = por %p402, %p403
      %p406 = scmp.ne.s32.totalorder %s389, %s405
      %p407 = scmp.eq.s32.totalorder %s31, 0
      %p408 = por %p406, %p407
      %s410 = sadd.s32 %s409, 1
      %p413 = scmp.eq.s32.totalorder %s25, 3
      %p414 = scmp.ne.s32.totalorder %s409, %s411
      %p415 = scmp.eq.s32.totalorder %s25, 0
      %p416 = por %p414, %p415
      %p417 = scmp.ne.s32.totalorder %s409, %s411
      %p418 = scmp.eq.s32.totalorder %s30, 3
      %p419 = por %p417, %p418
      %p420 = scmp.ne.s32.totalorder %s411, %s412
      %p421 = scmp.eq.s32.totalorder %s30, 0
      %p422 = por %p420, %p421
      %p423 = scmp.ne.s32.totalorder %s411, %s412
      %p424 = scmp.eq.s32.totalorder %s31, 3
      %p425 = por %p423, %p424
      %p427 = scmp.ne.s32.totalorder %s412, %s426
      %p428 = scmp.eq.s32.totalorder %s31, 0
      %p429 = por %p427, %p428
      %s431 = sadd.s32 %s430, 1
      %p434 = scmp.eq.s32.totalorder %s25, 3
      %p435 = scmp.ne.s32.totalorder %s430, %s432
      %p436 = scmp.eq.s32.totalorder %s25, 0
      %p437 = por %p435, %p436
      %p438 = scmp.ne.s32.totalorder %s430, %s432
      %p439 = scmp.eq.s32.totalorder %s30, 3
      %p440 = por %p438, %p439
      %p441 = scmp.ne.s32.totalorder %s432, %s433
      %p442 = scmp.eq.s32.totalorder %s30, 0
      %p443 = por %p441, %p442
      %p444 = scmp.ne.s32.totalorder %s432, %s433
      %p445 = scmp.eq.s32.totalorder %s31, 3
      %p446 = por %p444, %p445
      %p448 = scmp.ne.s32.totalorder %s433, %s447
      %p449 = scmp.eq.s32.totalorder %s31, 0
      %p450 = por %p448, %p449
      %s451 = ssub.s32 %s32, %s44
      %p452 = scmp.eq.s32.totalorder %s451, 0
      %s454 = sadd.s32 %s453, 1
      %s455 = scalar_select %p452, %s453, %s454
      %p458 = pneg %p452
      %p459 = scmp.eq.s32.totalorder %s25, 3
      %p460 = por %p458, %p459
      %p461 = scmp.ne.s32.totalorder %s453, %s456
      %p462 = scmp.eq.s32.totalorder %s25, 0
      %p463 = por %p461, %p462
      %p464 = scmp.ne.s32.totalorder %s453, %s456
      %p465 = scmp.eq.s32.totalorder %s30, 3
      %p466 = por %p464, %p465
      %p467 = scmp.ne.s32.totalorder %s456, %s457
      %p468 = scmp.eq.s32.totalorder %s30, 0
      %p469 = por %p467, %p468
      %p470 = scmp.ne.s32.totalorder %s456, %s457
      %p471 = scmp.eq.s32.totalorder %s31, 3
      %p472 = por %p470, %p471
      %p474 = scmp.ne.s32.totalorder %s457, %s473
      %p475 = scmp.eq.s32.totalorder %s31, 0
      %p476 = por %p474, %p475
      %p477 = scmp.le.s32.totalorder 1, %s25
      %p478 = scmp.lt.s32.totalorder %s25, 5
      %p479 = pnand %p477, %p478
      %p480 = pneg %p479
      // Predicated region
      $region9: #{tpu_custom_call.1} parent=5 // pred_check
        _
      $region10: #{tpu_custom_call.1} parent=5 // pred_check_branch
        %482 = sbr.rel (%p479) target = $region12
      $region11: #{tpu_custom_call.1} parent=5 // pred_region
        %s483 = ssub.s32 %s25, 1
        // Predicated region
        $region13: #{tpu_custom_call.1} parent=11 // pred_check
          %p484 = pneg %p422
        $region14: #{tpu_custom_call.1} parent=11 // pred_check_branch
          %486 = sbr.rel (%p484) target = $region16
        $region15: #{tpu_custom_call.1} parent=11 // pred_region
          _
        $region16: #{tpu_custom_call.1} parent=11 // pred_fallthru
          _
        // Predicated region
        $region17: #{tpu_custom_call.1} parent=11 // pred_check
          %p487 = pneg %p443
        $region18: #{tpu_custom_call.1} parent=11 // pred_check_branch
          %489 = sbr.rel (%p487) target = $region20
        $region19: #{tpu_custom_call.1} parent=11 // pred_region
          _
        $region20: #{tpu_custom_call.1} parent=11 // pred_fallthru
          _
      $region12: #{tpu_custom_call.1} parent=5 // pred_fallthru
        _
      %p490 = scmp.lt.s32.totalorder %s25, 4
      // Predicated region
      $region21: #{tpu_custom_call.1} parent=5 // pred_check
        %p491 = pneg %p490
      $region22: #{tpu_custom_call.1} parent=5 // pred_check_branch
        %493 = sbr.rel (%p491) target = $region24
      $region23: #{tpu_custom_call.1} parent=5 // pred_region
        // Predicated region
        $region25: #{tpu_custom_call.1} parent=23 // pred_check
          %p494 = pneg %p57
        $region26: #{tpu_custom_call.1} parent=23 // pred_check_branch
          %496 = sbr.rel (%p494) target = $region28
        $region27: #{tpu_custom_call.1} parent=23 // pred_region
          %p497 = scmp.lt.s32.totalorder %s32, 1
          %s498 = scalar_select %p497, %s32, 1
          %s499 = smul.addr %s498, 8
          %s500 = scalar_lea.vmem %s0, %s499
        $region28: #{tpu_custom_call.1} parent=23 // pred_fallthru
          _
        // Predicated region
        $region29: #{tpu_custom_call.1} parent=23 // pred_check
          %p501 = pneg %p83
        $region30: #{tpu_custom_call.1} parent=23 // pred_check_branch
          %503 = sbr.rel (%p501) target = $region32
        $region31: #{tpu_custom_call.1} parent=23 // pred_region
          %p504 = scmp.lt.s32.totalorder %s32, 1
          %s505 = scalar_select %p504, %s32, 1
          %s506 = scalar_lea.vmem %s1, %s505
        $region32: #{tpu_custom_call.1} parent=23 // pred_fallthru
          _
        // Predicated region
        $region33: #{tpu_custom_call.1} parent=23 // pred_check
          %p507 = pneg %p109
        $region34: #{tpu_custom_call.1} parent=23 // pred_check_branch
          %509 = sbr.rel (%p507) target = $region36
        $region35: #{tpu_custom_call.1} parent=23 // pred_region
          %p510 = scmp.lt.s32.totalorder %s33, 1
          %s511 = scalar_select %p510, %s33, 1
          %s512 = smul.addr %s511, 4
          %s513 = smul.addr %s512, 4
          %s514 = scalar_lea.vmem %s2, %s513
        $region36: #{tpu_custom_call.1} parent=23 // pred_fallthru
          _
        // Predicated region
        $region37: #{tpu_custom_call.1} parent=23 // pred_check
          %p515 = pneg %p135
        $region38: #{tpu_custom_call.1} parent=23 // pred_check_branch
          %517 = sbr.rel (%p515) target = $region40
        $region39: #{tpu_custom_call.1} parent=23 // pred_region
          %p518 = scmp.lt.s32.totalorder %s33, 1
          %s519 = scalar_select %p518, %s33, 1
          %s520 = scalar_lea.vmem %s3, %s519
        $region40: #{tpu_custom_call.1} parent=23 // pred_fallthru
          _
        // Predicated region
        $region41: #{tpu_custom_call.1} parent=23 // pred_check
          %p521 = pneg %p161
        $region42: #{tpu_custom_call.1} parent=23 // pred_check_branch
          %523 = sbr.rel (%p521) target = $region44
        $region43: #{tpu_custom_call.1} parent=23 // pred_region
          %p524 = scmp.lt.s32.totalorder %s33, 1
          %s525 = scalar_select %p524, %s33, 1
          %s526 = smul.addr %s525, 4
          %s527 = smul.addr %s526, 4
          %s528 = scalar_lea.vmem %s4, %s527
        $region44: #{tpu_custom_call.1} parent=23 // pred_fallthru
          _
        // Predicated region
        $region45: #{tpu_custom_call.1} parent=23 // pred_check
          %p529 = pneg %p187
        $region46: #{tpu_custom_call.1} parent=23 // pred_check_branch
          %531 = sbr.rel (%p529) target = $region48
        $region47: #{tpu_custom_call.1} parent=23 // pred_region
          %p532 = scmp.lt.s32.totalorder %s33, 1
          %s533 = scalar_select %p532, %s33, 1
          %s534 = scalar_lea.vmem %s5, %s533
        $region48: #{tpu_custom_call.1} parent=23 // pred_fallthru
          _
        // Predicated region
        $region49: #{tpu_custom_call.1} parent=23 // pred_check
          %p535 = pneg %p213
        $region50: #{tpu_custom_call.1} parent=23 // pred_check_branch
          %537 = sbr.rel (%p535) target = $region52
        $region51: #{tpu_custom_call.1} parent=23 // pred_region
          %p538 = scmp.lt.s32.totalorder %s33, 1
          %s539 = scalar_select %p538, %s33, 1
          %s540 = scalar_lea.vmem %s6, %s539
        $region52: #{tpu_custom_call.1} parent=23 // pred_fallthru
          _
        // Predicated region
        $region53: #{tpu_custom_call.1} parent=23 // pred_check
          %p541 = pneg %p239
        $region54: #{tpu_custom_call.1} parent=23 // pred_check_branch
          %543 = sbr.rel (%p541) target = $region56
        $region55: #{tpu_custom_call.1} parent=23 // pred_region
          %p544 = scmp.lt.s32.totalorder %s33, 1
          %s545 = scalar_select %p544, %s33, 1
          %s546 = scalar_lea.vmem %s7, %s545
        $region56: #{tpu_custom_call.1} parent=23 // pred_fallthru
          _
        // Predicated region
        $region57: #{tpu_custom_call.1} parent=23 // pred_check
          %p547 = pneg %p265
        $region58: #{tpu_custom_call.1} parent=23 // pred_check_branch
          %549 = sbr.rel (%p547) target = $region60
        $region59: #{tpu_custom_call.1} parent=23 // pred_region
          %p550 = scmp.lt.s32.totalorder %s33, 1
          %s551 = scalar_select %p550, %s33, 1
          %s552 = smul.addr %s551, 4
          %s553 = smul.addr %s552, 4
          %s554 = scalar_lea.vmem %s8, %s553
        $region60: #{tpu_custom_call.1} parent=23 // pred_fallthru
          _
        // Predicated region
        $region61: #{tpu_custom_call.1} parent=23 // pred_check
          %p555 = pneg %p291
        $region62: #{tpu_custom_call.1} parent=23 // pred_check_branch
          %557 = sbr.rel (%p555) target = $region64
        $region63: #{tpu_custom_call.1} parent=23 // pred_region
          %p558 = scmp.lt.s32.totalorder %s33, 1
          %s559 = scalar_select %p558, %s33, 1
          %s560 = scalar_lea.vmem %s9, %s559
        $region64: #{tpu_custom_call.1} parent=23 // pred_fallthru
          _
        // Predicated region
        $region65: #{tpu_custom_call.1} parent=23 // pred_check
          %p561 = pneg %p317
        $region66: #{tpu_custom_call.1} parent=23 // pred_check_branch
          %563 = sbr.rel (%p561) target = $region68
        $region67: #{tpu_custom_call.1} parent=23 // pred_region
          %p564 = scmp.lt.s32.totalorder %s33, 1
          %s565 = scalar_select %p564, %s33, 1
          %s566 = smul.addr %s565, 16
          %s567 = smul.addr %s566, 4
          %s568 = scalar_lea.vmem %s10, %s567
        $region68: #{tpu_custom_call.1} parent=23 // pred_fallthru
          _
        // Predicated region
        $region69: #{tpu_custom_call.1} parent=23 // pred_check
          %p569 = pneg %p343
        $region70: #{tpu_custom_call.1} parent=23 // pred_check_branch
          %571 = sbr.rel (%p569) target = $region72
        $region71: #{tpu_custom_call.1} parent=23 // pred_region
          %p572 = scmp.lt.s32.totalorder %s33, 1
          %s573 = scalar_select %p572, %s33, 1
          %s574 = scalar_lea.vmem %s11, %s573
        $region72: #{tpu_custom_call.1} parent=23 // pred_fallthru
          _
        // Predicated region
        $region73: #{tpu_custom_call.1} parent=23 // pred_check
          %p575 = pneg %p369
        $region74: #{tpu_custom_call.1} parent=23 // pred_check_branch
          %577 = sbr.rel (%p575) target = $region76
        $region75: #{tpu_custom_call.1} parent=23 // pred_region
          %p578 = scmp.lt.s32.totalorder %s33, 1
          %s579 = scalar_select %p578, %s33, 1
          %s580 = scalar_lea.vmem %s12, %s579
        $region76: #{tpu_custom_call.1} parent=23 // pred_fallthru
          _
        // Predicated region
        $region77: #{tpu_custom_call.1} parent=23 // pred_check
          %p581 = pneg %p395
        $region78: #{tpu_custom_call.1} parent=23 // pred_check_branch
          %583 = sbr.rel (%p581) target = $region80
        $region79: #{tpu_custom_call.1} parent=23 // pred_region
          %p584 = scmp.lt.s32.totalorder %s33, 1
          %s585 = scalar_select %p584, %s33, 1
          %s586 = scalar_lea.vmem %s13, %s585
        $region80: #{tpu_custom_call.1} parent=23 // pred_fallthru
          _
      $region24: #{tpu_custom_call.1} parent=5 // pred_fallthru
        _
      %p587 = scmp.le.s32.totalorder 1, %s25
      %p588 = scmp.lt.s32.totalorder %s25, 5
      %p589 = pnand %p587, %p588
      %p590 = pneg %p589
      // Predicated region
      $region81: #{tpu_custom_call.1} parent=5 // pred_check
        _
      $region82: #{tpu_custom_call.1} parent=5 // pred_check_branch
        %592 = sbr.rel (%p589) target = $region84
      $region83: #{tpu_custom_call.1} parent=5 // pred_region
        %s593 = ssub.s32 %s25, 1
        %p594 = scmp.lt.s32.totalorder %s34, 1
        %s595 = scalar_select %p594, %s34, 1
        %s596 = smul.addr %s595, 8
        %s597 = scalar_lea.vmem %s0, %s596
        %p598 = pneg %p63
        %p599 = pneg %p60
        %p600 = scmp.lt.s32.totalorder %s34, 1
        %s601 = scalar_select %p600, %s34, 1
        %s602 = scalar_lea.vmem %s1, %s601
        %p603 = pneg %p89
        %p604 = pneg %p86
        %p605 = scmp.lt.s32.totalorder %s35, 1
        %s606 = scalar_select %p605, %s35, 1
        %s607 = smul.addr %s606, 4
        %s608 = smul.addr %s607, 4
        %s609 = scalar_lea.vmem %s2, %s608
        %p610 = pneg %p115
        %p611 = pneg %p112
        %p612 = scmp.lt.s32.totalorder %s35, 1
        %s613 = scalar_select %p612, %s35, 1
        %s614 = scalar_lea.vmem %s3, %s613
        %p615 = pneg %p141
        %p616 = pneg %p138
        %p617 = scmp.lt.s32.totalorder %s35, 1
        %s618 = scalar_select %p617, %s35, 1
        %s619 = smul.addr %s618, 4
        %s620 = smul.addr %s619, 4
        %s621 = scalar_lea.vmem %s4, %s620
        %p622 = pneg %p167
        %p623 = pneg %p164
        %p624 = scmp.lt.s32.totalorder %s35, 1
        %s625 = scalar_select %p624, %s35, 1
        %s626 = scalar_lea.vmem %s5, %s625
        %p627 = pneg %p193
        %p628 = pneg %p190
        %p629 = scmp.lt.s32.totalorder %s35, 1
        %s630 = scalar_select %p629, %s35, 1
        %s631 = scalar_lea.vmem %s6, %s630
        %p632 = pneg %p219
        %p633 = pneg %p216
        %p634 = scmp.lt.s32.totalorder %s35, 1
        %s635 = scalar_select %p634, %s35, 1
        %s636 = scalar_lea.vmem %s7, %s635
        %p637 = pneg %p245
        %p638 = pneg %p242
        %p639 = scmp.lt.s32.totalorder %s35, 1
        %s640 = scalar_select %p639, %s35, 1
        %s641 = smul.addr %s640, 4
        %s642 = smul.addr %s641, 4
        %s643 = scalar_lea.vmem %s8, %s642
        %p644 = pneg %p271
        %p645 = pneg %p268
        %p646 = scmp.lt.s32.totalorder %s35, 1
        %s647 = scalar_select %p646, %s35, 1
        %s648 = scalar_lea.vmem %s9, %s647
        %p649 = pneg %p297
        %p650 = pneg %p294
        %p651 = scmp.lt.s32.totalorder %s35, 1
        %s652 = scalar_select %p651, %s35, 1
        %s653 = smul.addr %s652, 16
        %s654 = smul.addr %s653, 4
        %s655 = scalar_lea.vmem %s10, %s654
        %p656 = pneg %p323
        %p657 = pneg %p320
        %p658 = scmp.lt.s32.totalorder %s35, 1
        %s659 = scalar_select %p658, %s35, 1
        %s660 = scalar_lea.vmem %s11, %s659
        %p661 = pneg %p349
        %p662 = pneg %p346
        %p663 = scmp.lt.s32.totalorder %s35, 1
        %s664 = scalar_select %p663, %s35, 1
        %s665 = scalar_lea.vmem %s12, %s664
        %p666 = pneg %p375
        %p667 = pneg %p372
        %p668 = scmp.lt.s32.totalorder %s35, 1
        %s669 = scalar_select %p668, %s35, 1
        %s670 = scalar_lea.vmem %s13, %s669
        %p671 = pneg %p401
        %p672 = pneg %p398
        %p673 = pneg %p422
        %p674 = pneg %p419
        %p675 = pneg %p443
        %p676 = pneg %p440
        %p677 = pneg %p469
        %p678 = pneg %p466
        %s679 = sand.u32 %s456, 1
        %s680 = scalar_lea.sflag [#allocation4], %s679
        %s681 = sand.u32 %s456, 1
        %s682 = smul.addr %s681, 8
        %s683 = scalar_lea.vmem [#allocation3], %s682
        %p684 = scmp.lt.s32.totalorder %s34, 1
        %s685 = scalar_select %p684, %s34, 1
        %s686 = smul.addr %s685, 8
        %s687 = scalar_lea.vmem %s0, %s686
        %p688 = scmp.lt.s32.totalorder %s34, 1
        %s689 = scalar_select %p688, %s34, 1
        %s690 = scalar_lea.vmem %s1, %s689
        %p691 = scmp.lt.s32.totalorder %s35, 1
        %s692 = scalar_select %p691, %s35, 1
        %s693 = smul.addr %s692, 4
        %s694 = smul.addr %s693, 4
        %s695 = scalar_lea.vmem %s2, %s694
        %p696 = scmp.lt.s32.totalorder %s35, 1
        %s697 = scalar_select %p696, %s35, 1
        %s698 = scalar_lea.vmem %s3, %s697
        %p699 = scmp.lt.s32.totalorder %s35, 1
        %s700 = scalar_select %p699, %s35, 1
        %s701 = smul.addr %s700, 4
        %s702 = smul.addr %s701, 4
        %s703 = scalar_lea.vmem %s4, %s702
        %p704 = scmp.lt.s32.totalorder %s35, 1
        %s705 = scalar_select %p704, %s35, 1
        %s706 = scalar_lea.vmem %s5, %s705
        %p707 = scmp.lt.s32.totalorder %s35, 1
        %s708 = scalar_select %p707, %s35, 1
        %s709 = scalar_lea.vmem %s6, %s708
        %p710 = scmp.lt.s32.totalorder %s35, 1
        %s711 = scalar_select %p710, %s35, 1
        %s712 = scalar_lea.vmem %s7, %s711
        %p713 = scmp.lt.s32.totalorder %s35, 1
        %s714 = scalar_select %p713, %s35, 1
        %s715 = smul.addr %s714, 4
        %s716 = smul.addr %s715, 4
        %s717 = scalar_lea.vmem %s8, %s716
        %p718 = scmp.lt.s32.totalorder %s35, 1
        %s719 = scalar_select %p718, %s35, 1
        %s720 = scalar_lea.vmem %s9, %s719
        %p721 = scmp.lt.s32.totalorder %s35, 1
        %s722 = scalar_select %p721, %s35, 1
        %s723 = smul.addr %s722, 16
        %s724 = smul.addr %s723, 4
        %s725 = scalar_lea.vmem %s10, %s724
        %p726 = scmp.lt.s32.totalorder %s35, 1
        %s727 = scalar_select %p726, %s35, 1
        %s728 = scalar_lea.vmem %s11, %s727
        %p729 = scmp.lt.s32.totalorder %s35, 1
        %s730 = scalar_select %p729, %s35, 1
        %s731 = scalar_lea.vmem %s12, %s730
        %p732 = scmp.lt.s32.totalorder %s35, 1
        %s733 = scalar_select %p732, %s35, 1
        %s734 = scalar_lea.vmem %s13, %s733
        %p736 = scmp.eq.s32.totalorder %s35, 0
        // Predicated region
        $region85: #{tpu_custom_call.1} parent=83 // pred_check
          %p737 = pneg %p736
        $region86: #{tpu_custom_call.1} parent=83 // pred_check_branch
          %739 = sbr.rel (%p737) target = $region88
        $region87: #{tpu_custom_call.1} parent=83 // pred_region
          %v740 = vld [vmem:[%s687] sm:$0xff]
          %vm741 = vcmask 261120
          %742 = vst.msk [vmem:[#allocation2] sm:$0xff] %vm741, %v740
        $region88: #{tpu_custom_call.1} parent=83 // pred_fallthru
          _
        %v743 = vld [vmem:[#allocation2] sm:$0xff]
        %v744 = vld [vmem:[%s690] sm:$0x1]
        %v745 = vld [vmem:[%s709] sm:$0x1]
        %v746 = vld [vmem:[%s712] sm:$0x1]
        %vm747 = vcmask 261120
        %v748 = vsel %vm747, %v743, 0.0
        %749 = vadd.xlane.f32.xlu0 %v748
        %v750 = vpop.xlane.xlu0 %749
        %v751 = vrcp.pop 32.0
        %v752 = vmul.f32 32.0, %v751
        %v753 = vsub.f32 1.0, %v752
        %v754 = vmul.f32 %v751, %v753
        %v755 = vadd.f32 %v751, %v754
        %vm756 = vweird.f32 %v751
        %v757 = vsel %vm756, %v751, %v755
        %v758 = vmul.f32 %v750, %v757
        %v759 = vsub.f32 %v743, %v758
        %v760 = vmul.f32 %v759, %v759
        %v761 = vsel %vm747, %v760, 0.0
        %762 = vadd.xlane.f32.xlu0 %v761
        %v763 = vpop.xlane.xlu0 %762
        %v764 = vmul.f32 %v763, 0.032258064
        %v765 = vrsqrt.pop %v764
        %v766 = vmul.f32 %v765, %v764
        %v767 = vmul.f32 %v766, %v765
        %v768 = vmul.f32 0.5, %v767
        %v769 = vsub.f32 1.5, %v768
        %v770 = vmul.f32 %v765, %v769
        %v771 = vmul.f32 %v764, %v770
        %vm772 = vcmp.eq.f32.partialorder %v764, inf
        %v773 = vsel %vm772, %v764, %v771
        %vm774 = vcmp.eq.f32.partialorder %v764, 0.0
        %v775 = vand.u32 %v764, 2147483648
        %v776 = vsel %vm774, %v775, %v773
        %v777 = vadd.f32 %v776, 1e-06
        %v778 = vrcp.pop %v777
        %v779 = vmul.f32 %v777, %v778
        %v780 = vsub.f32 1.0, %v779
        %v781 = vmul.f32 %v778, %v780
        %v782 = vadd.f32 %v778, %v781
        %vm783 = vweird.f32 %v777
        %vm784 = vweird.f32 %v778
        %vm785 = vmor %vm783, %vm784
        %v786 = vsel %vm785, %v778, %v782
        %v787 = vand.u32 2147483647, %v777
        %vm788 = vcmp.eq.f32.partialorder %v787, 8.507059e+37
        %v789 = vand.u32 %v777, 2147483648
        %v790 = vor.u32 1.1754944e-38, %v789
        %v791 = vsel %vm788, %v790, %v786
        %v792 = vmul.f32 %v759, %v791
        %v794 = vperm.slane %v745, 0
        %v796 = vmul.f32 %v794, %v792
        %v798 = vperm.slane %v746, 0
        %v800 = vadd.f32 %v796, %v798
        %v801 = vpack.c.bf16 %v800, %v800
        %v802 = vld [vmem:[%s695] sm:$0xf]
        %v803 = vld [vmem:[%s695 + $0x4] sm:$0xf]
        %v804 = vld [vmem:[%s695 + $0x8] sm:$0xf]
        %v805 = vld [vmem:[%s695 + $0xc] sm:$0xf]
        %v806 = vld [vmem:[%s698] sm:$0x1]
        %v808 = vperm.slane %v806, 0
        %v814 = vunpack.c.l.b16 %v802
        %v815 = vunpack.c.l.b16 %v803
        %v816 = vunpack.c.l.b16 %v804
        %v817 = vunpack.c.l.b16 %v805
        %v818 = vpack.c.b16 %v815, %v814
        %v819 = vpack.c.b16 %v817, %v816
        %v823 = vsel %vm747, %v801, 0
        %825 = vmatpush.bf16.msra.mxu0 0
        %826 = vmatpush.bf16.msra.mxu0 0
        %827 = vmatpush.bf16.msra.mxu0 0
        %828 = vmatpush.bf16.msra.mxu0 0
        %829 = vmatpush.bf16.msra.mxu0 0
        %830 = vmatpush.bf16.msra.mxu0 0
        %831 = vmatpush.bf16.msra.mxu0 %v819
        %832 = vmatpush.bf16.msra.mxu0 %v818
        %833 = vmatmul.bf16.gmra.mxu0 %v823
        %v834 = vpop.f32.mrf.mxu0
        %v835 = vadd.f32 %v808, %v834
        %v836 = vpop.f32.mrf.mxu0
        %837 = vdwg.mxu0
        %839 = vrot.lane.b32.xlu0 %v835, 120
        %v840 = vpop.permute.xlu0 %839
        %842 = vrot.lane.b32.xlu0 %v835, 112
        %v843 = vpop.permute.xlu0 %842
        %845 = vrot.lane.b32.xlu0 %v835, 104
        %v846 = vpop.permute.xlu0 %845
        %v848 = vpack.c.bf16 %v835, %v835
        %v849 = vpack.c.bf16 %v840, %v840
        %v850 = vpack.c.bf16 %v843, %v843
        %v851 = vpack.c.bf16 %v846, %v846
        %v853 = vunpack.c.l.b16 %v848
        %v854 = vpack.c.b16 %v853, %v853
        %855 = vrot.lane.b32.xlu0 %v854, 96
        %v856 = vpop.permute.xlu0 %855
        %vm857 = vcmask 64512
        %v859 = vsel %vm857, %v848, 0
        %v862 = vsel %vm857, %v856, 0
        %864 = vmatpush.bf16.xpose.msra.mxu0 0
        %865 = vmatpush.bf16.xpose.msra.mxu0 0
        %866 = vmatpush.bf16.xpose.msra.mxu0 0
        %867 = vmatpush.bf16.xpose.msra.mxu0 0
        %868 = vmatpush.bf16.xpose.msra.mxu0 0
        %869 = vmatpush.bf16.xpose.msra.mxu0 0
        %870 = vmatpush.bf16.xpose.msra.mxu0 0
        %871 = vmatpush.bf16.xpose.msra.mxu0 %v862
        %872 = vmatmul.bf16.gmra.mxu0 %v859
        %v873 = vpop.f32.mrf.mxu0
        %v874 = vadd.f32 0.0, %v873
        %v875 = vpop.f32.mrf.mxu0
        %876 = vdwg.mxu0
        %v878 = vunpack.c.l.b16 %v849
        %v879 = vpack.c.b16 %v878, %v878
        %880 = vrot.lane.b32.xlu0 %v879, 96
        %v881 = vpop.permute.xlu0 %880
        %v883 = vsel %vm857, %v849, 0
        %v886 = vsel %vm857, %v881, 0
        %888 = vmatpush.bf16.xpose.msra.mxu0 0
        %889 = vmatpush.bf16.xpose.msra.mxu0 0
        %890 = vmatpush.bf16.xpose.msra.mxu0 0
        %891 = vmatpush.bf16.xpose.msra.mxu0 0
        %892 = vmatpush.bf16.xpose.msra.mxu0 0
        %893 = vmatpush.bf16.xpose.msra.mxu0 0
        %894 = vmatpush.bf16.xpose.msra.mxu0 0
        %895 = vmatpush.bf16.xpose.msra.mxu0 %v886
        %896 = vmatmul.bf16.gmra.mxu0 %v883
        %v897 = vpop.f32.mrf.mxu0
        %v898 = vadd.f32 0.0, %v897
        %v899 = vpop.f32.mrf.mxu0
        %900 = vdwg.mxu0
        %v902 = vunpack.c.l.b16 %v850
        %v903 = vpack.c.b16 %v902, %v902
        %904 = vrot.lane.b32.xlu0 %v903, 96
        %v905 = vpop.permute.xlu0 %904
        %v907 = vsel %vm857, %v850, 0
        %v910 = vsel %vm857, %v905, 0
        %912 = vmatpush.bf16.xpose.msra.mxu0 0
        %913 = vmatpush.bf16.xpose.msra.mxu0 0
        %914 = vmatpush.bf16.xpose.msra.mxu0 0
        %915 = vmatpush.bf16.xpose.msra.mxu0 0
        %916 = vmatpush.bf16.xpose.msra.mxu0 0
        %917 = vmatpush.bf16.xpose.msra.mxu0 0
        %918 = vmatpush.bf16.xpose.msra.mxu0 0
        %919 = vmatpush.bf16.xpose.msra.mxu0 %v910
        %920 = vmatmul.bf16.gmra.mxu0 %v907
        %v921 = vpop.f32.mrf.mxu0
        %v922 = vadd.f32 0.0, %v921
        %v923 = vpop.f32.mrf.mxu0
        %924 = vdwg.mxu0
        %v926 = vunpack.c.l.b16 %v851
        %v927 = vpack.c.b16 %v926, %v926
        %928 = vrot.lane.b32.xlu0 %v927, 96
        %v929 = vpop.permute.xlu0 %928
        %v931 = vsel %vm857, %v851, 0
        %v934 = vsel %vm857, %v929, 0
        %936 = vmatpush.bf16.xpose.msra.mxu0 0
        %937 = vmatpush.bf16.xpose.msra.mxu0 0
        %938 = vmatpush.bf16.xpose.msra.mxu0 0
        %939 = vmatpush.bf16.xpose.msra.mxu0 0
        %940 = vmatpush.bf16.xpose.msra.mxu0 0
        %941 = vmatpush.bf16.xpose.msra.mxu0 0
        %942 = vmatpush.bf16.xpose.msra.mxu0 0
        %943 = vmatpush.bf16.xpose.msra.mxu0 %v934
        %944 = vmatmul.bf16.gmra.mxu0 %v931
        %v945 = vpop.f32.mrf.mxu0
        %v946 = vadd.f32 0.0, %v945
        %v947 = vpop.f32.mrf.mxu0
        %948 = vdwg.mxu0
        %v949 = vmul.f32 %v874, 0.35355338
        %v950 = vmul.f32 %v898, 0.35355338
        %v951 = vmul.f32 %v922, 0.35355338
        %v952 = vmul.f32 %v946, 0.35355338
        %v954 = vperm.slane %v744, 0
        %v956 = vadd.f32 %v949, %v954
        %v957 = vadd.f32 %v950, %v954
        %v958 = vadd.f32 %v951, %v954
        %v959 = vadd.f32 %v952, %v954
        %v960 = vsel %vm857, %v956, -inf
        %961 = vmax.xlane.f32.xlu0 %v960
        %v962 = vpop.xlane.xlu0 %961
        %v963 = vsel %vm857, %v957, -inf
        %964 = vmax.xlane.f32.xlu0 %v963
        %v965 = vpop.xlane.xlu0 %964
        %v966 = vsel %vm857, %v958, -inf
        %967 = vmax.xlane.f32.xlu0 %v966
        %v968 = vpop.xlane.xlu0 %967
        %v969 = vsel %vm857, %v959, -inf
        %970 = vmax.xlane.f32.xlu0 %v969
        %v971 = vpop.xlane.xlu0 %970
        %v972 = vsub.f32 %v956, %v962
        %v973 = vsub.f32 %v957, %v965
        %v974 = vsub.f32 %v958, %v968
        %v975 = vsub.f32 %v959, %v971
        %v976 = vmul.f32 %v972, 1.442695
        %v977 = vpow.pop %v976
        %v978 = vmul.f32 %v973, 1.442695
        %v979 = vpow.pop %v978
        %v980 = vmul.f32 %v974, 1.442695
        %v981 = vpow.pop %v980
        %v982 = vmul.f32 %v975, 1.442695
        %v983 = vpow.pop %v982
        %v984 = vsel %vm857, %v977, 0.0
        %985 = vadd.xlane.f32.xlu0 %v984
        %v986 = vpop.xlane.xlu0 %985
        %v987 = vsel %vm857, %v979, 0.0
        %988 = vadd.xlane.f32.xlu0 %v987
        %v989 = vpop.xlane.xlu0 %988
        %v990 = vsel %vm857, %v981, 0.0
        %991 = vadd.xlane.f32.xlu0 %v990
        %v992 = vpop.xlane.xlu0 %991
        %v993 = vsel %vm857, %v983, 0.0
        %994 = vadd.xlane.f32.xlu0 %v993
        %v995 = vpop.xlane.xlu0 %994
        %v996 = vrcp.pop %v986
        %v997 = vrcp.pop %v989
        %v998 = vrcp.pop %v992
        %v999 = vrcp.pop %v995
        %v1000 = vmul.f32 %v977, %v996
        %v1001 = vmul.f32 %v979, %v997
        %v1002 = vmul.f32 %v981, %v998
        %v1003 = vmul.f32 %v983, %v999
        %v1004 = vpack.c.bf16 %v1000, %v1000
        %v1005 = vpack.c.bf16 %v1001, %v1001
        %v1006 = vpack.c.bf16 %v1002, %v1002
        %v1007 = vpack.c.bf16 %v1003, %v1003
        %1008 = vrot.lane.b32.xlu0 %v854, 64
        %v1009 = vpop.permute.xlu0 %1008
        %v1011 = vsel %vm857, %v1004, 0
        %vm1013 = vcmask 1043456
        %v1015 = vsel %vm1013, %v1009, 0
        %1017 = vmatpush.bf16.msra.mxu0 0
        %1018 = vmatpush.bf16.msra.mxu0 0
        %1019 = vmatpush.bf16.msra.mxu0 0
        %1020 = vmatpush.bf16.msra.mxu0 0
        %1021 = vmatpush.bf16.msra.mxu0 0
        %1022 = vmatpush.bf16.msra.mxu0 0
        %1023 = vmatpush.bf16.msra.mxu0 0
        %1024 = vmatpush.bf16.msra.mxu0 %v1015
        %1025 = vmatmul.bf16.gmra.mxu0 %v1011
        %v1026 = vpop.f32.mrf.mxu0
        %v1027 = vadd.f32 0.0, %v1026
        %v1028 = vpop.f32.mrf.mxu0
        %1029 = vdwg.mxu0
        %1030 = vrot.lane.b32.xlu0 %v879, 64
        %v1031 = vpop.permute.xlu0 %1030
        %v1033 = vsel %vm857, %v1005, 0
        %v1036 = vsel %vm1013, %v1031, 0
        %1038 = vmatpush.bf16.msra.mxu0 0
        %1039 = vmatpush.bf16.msra.mxu0 0
        %1040 = vmatpush.bf16.msra.mxu0 0
        %1041 = vmatpush.bf16.msra.mxu0 0
        %1042 = vmatpush.bf16.msra.mxu0 0
        %1043 = vmatpush.bf16.msra.mxu0 0
        %1044 = vmatpush.bf16.msra.mxu0 0
        %1045 = vmatpush.bf16.msra.mxu0 %v1036
        %1046 = vmatmul.bf16.gmra.mxu0 %v1033
        %v1047 = vpop.f32.mrf.mxu0
        %v1048 = vadd.f32 0.0, %v1047
        %v1049 = vpop.f32.mrf.mxu0
        %1050 = vdwg.mxu0
        %1051 = vrot.lane.b32.xlu0 %v903, 64
        %v1052 = vpop.permute.xlu0 %1051
        %v1054 = vsel %vm857, %v1006, 0
        %v1057 = vsel %vm1013, %v1052, 0
        %1059 = vmatpush.bf16.msra.mxu0 0
        %1060 = vmatpush.bf16.msra.mxu0 0
        %1061 = vmatpush.bf16.msra.mxu0 0
        %1062 = vmatpush.bf16.msra.mxu0 0
        %1063 = vmatpush.bf16.msra.mxu0 0
        %1064 = vmatpush.bf16.msra.mxu0 0
        %1065 = vmatpush.bf16.msra.mxu0 0
        %1066 = vmatpush.bf16.msra.mxu0 %v1057
        %1067 = vmatmul.bf16.gmra.mxu0 %v1054
        %v1068 = vpop.f32.mrf.mxu0
        %v1069 = vadd.f32 0.0, %v1068
        %v1070 = vpop.f32.mrf.mxu0
        %1071 = vdwg.mxu0
        %1072 = vrot.lane.b32.xlu0 %v927, 64
        %v1073 = vpop.permute.xlu0 %1072
        %v1075 = vsel %vm857, %v1007, 0
        %v1078 = vsel %vm1013, %v1073, 0
        %1080 = vmatpush.bf16.msra.mxu0 0
        %1081 = vmatpush.bf16.msra.mxu0 0
        %1082 = vmatpush.bf16.msra.mxu0 0
        %1083 = vmatpush.bf16.msra.mxu0 0
        %1084 = vmatpush.bf16.msra.mxu0 0
        %1085 = vmatpush.bf16.msra.mxu0 0
        %1086 = vmatpush.bf16.msra.mxu0 0
        %1087 = vmatpush.bf16.msra.mxu0 %v1078
        %1088 = vmatmul.bf16.gmra.mxu0 %v1075
        %v1089 = vpop.f32.mrf.mxu0
        %v1090 = vadd.f32 0.0, %v1089
        %v1091 = vpop.f32.mrf.mxu0
        %1092 = vdwg.mxu0
        %1094 = vrot.lane.b32.xlu0 %v1048, 8
        %v1095 = vpop.permute.xlu0 %1094
        %1098 = vrot.lane.b32.xlu0 %v1069, 16
        %v1099 = vpop.permute.xlu0 %1098
        %1102 = vrot.lane.b32.xlu0 %v1090, 24
        %v1103 = vpop.permute.xlu0 %1102
        %v1105 = vsel %vm857, %v1027, %v1095
        %vm1106 = vcmask 130048
        %v1107 = vsel %vm1106, %v1105, %v1099
        %vm1108 = vcmask 195584
        %v1109 = vsel %vm1108, %v1107, %v1103
        %v1110 = vpack.c.bf16 %v1109, %v1109
        %v1111 = vld [vmem:[%s703] sm:$0xf]
        %v1112 = vld [vmem:[%s703 + $0x4] sm:$0xf]
        %v1113 = vld [vmem:[%s703 + $0x8] sm:$0xf]
        %v1114 = vld [vmem:[%s703 + $0xc] sm:$0xf]
        %v1119 = vunpack.c.l.b16 %v1111
        %v1120 = vunpack.c.l.b16 %v1112
        %v1121 = vunpack.c.l.b16 %v1113
        %v1122 = vunpack.c.l.b16 %v1114
        %v1123 = vpack.c.b16 %v1120, %v1119
        %v1124 = vpack.c.b16 %v1122, %v1121
        %v1128 = vsel %vm747, %v1110, 0
        %1130 = vmatpush.bf16.msra.mxu0 0
        %1131 = vmatpush.bf16.msra.mxu0 0
        %1132 = vmatpush.bf16.msra.mxu0 0
        %1133 = vmatpush.bf16.msra.mxu0 0
        %1134 = vmatpush.bf16.msra.mxu0 0
        %1135 = vmatpush.bf16.msra.mxu0 0
        %1136 = vmatpush.bf16.msra.mxu0 %v1124
        %1137 = vmatpush.bf16.msra.mxu0 %v1123
        %1138 = vmatmul.bf16.gmra.mxu0 %v1128
        %v1139 = vpop.f32.mrf.mxu0
        %v1140 = vadd.f32 0.0, %v1139
        %v1141 = vpop.f32.mrf.mxu0
        %1142 = vdwg.mxu0
        %v1143 = vadd.f32 %v743, %v1140
        %v1144 = vld [vmem:[%s706] sm:$0x1]
        %v1146 = vperm.slane %v1144, 0
        %v1148 = vadd.f32 %v1143, %v1146
        %v1149 = vld [vmem:[%s731] sm:$0x1]
        %v1150 = vld [vmem:[%s734] sm:$0x1]
        %v1151 = vsel %vm747, %v1148, 0.0
        %1152 = vadd.xlane.f32.xlu0 %v1151
        %v1153 = vpop.xlane.xlu0 %1152
        %v1154 = vmul.f32 %v1153, %v757
        %v1155 = vsub.f32 %v1148, %v1154
        %v1156 = vmul.f32 %v1155, %v1155
        %v1157 = vsel %vm747, %v1156, 0.0
        %1158 = vadd.xlane.f32.xlu0 %v1157
        %v1159 = vpop.xlane.xlu0 %1158
        %v1160 = vmul.f32 %v1159, 0.032258064
        %v1161 = vrsqrt.pop %v1160
        %v1162 = vmul.f32 %v1161, %v1160
        %v1163 = vmul.f32 %v1162, %v1161
        %v1164 = vmul.f32 0.5, %v1163
        %v1165 = vsub.f32 1.5, %v1164
        %v1166 = vmul.f32 %v1161, %v1165
        %v1167 = vmul.f32 %v1160, %v1166
        %vm1168 = vcmp.eq.f32.partialorder %v1160, inf
        %v1169 = vsel %vm1168, %v1160, %v1167
        %vm1170 = vcmp.eq.f32.partialorder %v1160, 0.0
        %v1171 = vand.u32 %v1160, 2147483648
        %v1172 = vsel %vm1170, %v1171, %v1169
        %v1173 = vadd.f32 %v1172, 1e-06
        %v1174 = vrcp.pop %v1173
        %v1175 = vmul.f32 %v1173, %v1174
        %v1176 = vsub.f32 1.0, %v1175
        %v1177 = vmul.f32 %v1174, %v1176
        %v1178 = vadd.f32 %v1174, %v1177
        %vm1179 = vweird.f32 %v1173
        %vm1180 = vweird.f32 %v1174
        %vm1181 = vmor %vm1179, %vm1180
        %v1182 = vsel %vm1181, %v1174, %v1178
        %v1183 = vand.u32 2147483647, %v1173
        %vm1184 = vcmp.eq.f32.partialorder %v1183, 8.507059e+37
        %v1185 = vand.u32 %v1173, 2147483648
        %v1186 = vor.u32 1.1754944e-38, %v1185
        %v1187 = vsel %vm1184, %v1186, %v1182
        %v1188 = vmul.f32 %v1155, %v1187
        %v1190 = vperm.slane %v1149, 0
        %v1192 = vmul.f32 %v1190, %v1188
        %v1194 = vperm.slane %v1150, 0
        %v1196 = vadd.f32 %v1192, %v1194
        %v1197 = vpack.c.bf16 %v1196, %v1196
        %v1198 = vld [vmem:[%s717] sm:$0xf]
        %v1199 = vld [vmem:[%s717 + $0x4] sm:$0xf]
        %v1200 = vld [vmem:[%s717 + $0x8] sm:$0xf]
        %v1201 = vld [vmem:[%s717 + $0xc] sm:$0xf]
        %v1202 = vld [vmem:[%s720] sm:$0x1]
        %v1204 = vperm.slane %v1202, 0
        %v1210 = vunpack.c.l.b16 %v1198
        %v1211 = vunpack.c.l.b16 %v1199
        %v1212 = vunpack.c.l.b16 %v1200
        %v1213 = vunpack.c.l.b16 %v1201
        %v1214 = vpack.c.b16 %v1211, %v1210
        %v1215 = vpack.c.b16 %v1213, %v1212
        %v1219 = vsel %vm747, %v1197, 0
        %1221 = vmatpush.bf16.msra.mxu0 0
        %1222 = vmatpush.bf16.msra.mxu0 0
        %1223 = vmatpush.bf16.msra.mxu0 0
        %1224 = vmatpush.bf16.msra.mxu0 0
        %1225 = vmatpush.bf16.msra.mxu0 0
        %1226 = vmatpush.bf16.msra.mxu0 0
        %1227 = vmatpush.bf16.msra.mxu0 %v1215
        %1228 = vmatpush.bf16.msra.mxu0 %v1214
        %1229 = vmatmul.bf16.gmra.mxu0 %v1219
        %v1230 = vpop.f32.mrf.mxu0
        %v1231 = vadd.f32 %v1204, %v1230
        %v1232 = vpop.f32.mrf.mxu0
        %1233 = vdwg.mxu0
        %v1234 = vmul.f32 %v1231, 0.5
        %v1235 = vmul.f32 %v1231, 0.044715
        %v1236 = vmul.f32 %v1235, %v1231
        %v1237 = vmul.f32 %v1236, %v1231
        %v1238 = vadd.f32 %v1231, %v1237
        %v1239 = vmul.f32 %v1238, 0.7978846
        %v1240 = vtanh.pop %v1239
        %v1241 = vadd.f32 %v1240, 1.0
        %v1242 = vmul.f32 %v1234, %v1241
        %v1243 = vpack.c.bf16 %v1242, %v1242
        %v1244 = vld [vmem:[%s725] sm:$0xf]
        %v1245 = vld [vmem:[%s725 + $0x4] sm:$0xf]
        %v1246 = vld [vmem:[%s725 + $0x8] sm:$0xf]
        %v1247 = vld [vmem:[%s725 + $0xc] sm:$0xf]
        %v1248 = vld [vmem:[%s725 + $0x10] sm:$0xf]
        %v1249 = vld [vmem:[%s725 + $0x14] sm:$0xf]
        %v1250 = vld [vmem:[%s725 + $0x18] sm:$0xf]
        %v1251 = vld [vmem:[%s725 + $0x1c] sm:$0xf]
        %v1252 = vld [vmem:[%s725 + $0x20] sm:$0xf]
        %v1253 = vld [vmem:[%s725 + $0x24] sm:$0xf]
        %v1254 = vld [vmem:[%s725 + $0x28] sm:$0xf]
        %v1255 = vld [vmem:[%s725 + $0x2c] sm:$0xf]
        %v1256 = vld [vmem:[%s725 + $0x30] sm:$0xf]
        %v1257 = vld [vmem:[%s725 + $0x34] sm:$0xf]
        %v1258 = vld [vmem:[%s725 + $0x38] sm:$0xf]
        %v1259 = vld [vmem:[%s725 + $0x3c] sm:$0xf]
        %v1276 = vunpack.c.l.b16 %v1244
        %v1277 = vunpack.c.l.b16 %v1245
        %v1278 = vunpack.c.l.b16 %v1246
        %v1279 = vunpack.c.l.b16 %v1247
        %v1280 = vunpack.c.l.b16 %v1248
        %v1281 = vunpack.c.l.b16 %v1249
        %v1282 = vunpack.c.l.b16 %v1250
        %v1283 = vunpack.c.l.b16 %v1251
        %v1284 = vunpack.c.l.b16 %v1252
        %v1285 = vunpack.c.l.b16 %v1253
        %v1286 = vunpack.c.l.b16 %v1254
        %v1287 = vunpack.c.l.b16 %v1255
        %v1288 = vunpack.c.l.b16 %v1256
        %v1289 = vunpack.c.l.b16 %v1257
        %v1290 = vunpack.c.l.b16 %v1258
        %v1291 = vunpack.c.l.b16 %v1259
        %v1292 = vpack.c.b16 %v1277, %v1276
        %v1293 = vpack.c.b16 %v1279, %v1278
        %v1294 = vpack.c.b16 %v1281, %v1280
        %v1295 = vpack.c.b16 %v1283, %v1282
        %v1296 = vpack.c.b16 %v1285, %v1284
        %v1297 = vpack.c.b16 %v1287, %v1286
        %v1298 = vpack.c.b16 %v1289, %v1288
        %v1299 = vpack.c.b16 %v1291, %v1290
        %1308 = vmatpush.bf16.msra.mxu0 %v1299
        %1309 = vmatpush.bf16.msra.mxu0 %v1298
        %1310 = vmatpush.bf16.msra.mxu0 %v1297
        %1311 = vmatpush.bf16.msra.mxu0 %v1296
        %1312 = vmatpush.bf16.msra.mxu0 %v1295
        %1313 = vmatpush.bf16.msra.mxu0 %v1294
        %1314 = vmatpush.bf16.msra.mxu0 %v1293
        %1315 = vmatpush.bf16.msra.mxu0 %v1292
        %1316 = vmatmul.bf16.gmra.mxu0 %v1243
        %v1317 = vpop.f32.mrf.mxu0
        %v1318 = vadd.f32 0.0, %v1317
        %v1319 = vpop.f32.mrf.mxu0
        %1320 = vdwg.mxu0
        %v1321 = vadd.f32 %v1148, %v1318
        %v1322 = vld [vmem:[%s728] sm:$0x1]
        %v1324 = vperm.slane %v1322, 0
        %v1326 = vadd.f32 %v1321, %v1324
        %1327 = vst.msk [vmem:[#allocation2] sm:$0xff] %vm747, %v1326
        %p1328 = scmp.eq.s32.totalorder %s35, 1
        // Predicated region
        $region89: #{tpu_custom_call.1} parent=83 // pred_check
          %p1329 = pneg %p1328
        $region90: #{tpu_custom_call.1} parent=83 // pred_check_branch
          %1331 = sbr.rel (%p1329) target = $region92
        $region91: #{tpu_custom_call.1} parent=83 // pred_region
          %v1332 = vpack.c.bf16 %v1326, %v1326
          %v1333 = vld [vmem:[%s14] sm:$0xf]
          %v1334 = vld [vmem:[%s14 + $0x4] sm:$0xf]
          %v1335 = vld [vmem:[%s14 + $0x8] sm:$0xf]
          %v1336 = vld [vmem:[%s14 + $0xc] sm:$0xf]
          %v1337 = vld [vmem:[%s15] sm:$0x1]
          %v1339 = vperm.slane %v1337, 0
          %v1345 = vunpack.c.l.b16 %v1333
          %v1346 = vunpack.c.l.b16 %v1334
          %v1347 = vunpack.c.l.b16 %v1335
          %v1348 = vunpack.c.l.b16 %v1336
          %v1349 = vpack.c.b16 %v1346, %v1345
          %v1350 = vpack.c.b16 %v1348, %v1347
          %v1354 = vsel %vm747, %v1332, 0
          %1356 = vmatpush.bf16.msra.mxu0 0
          %1357 = vmatpush.bf16.msra.mxu0 0
          %1358 = vmatpush.bf16.msra.mxu0 0
          %1359 = vmatpush.bf16.msra.mxu0 0
          %1360 = vmatpush.bf16.msra.mxu0 0
          %1361 = vmatpush.bf16.msra.mxu0 0
          %1362 = vmatpush.bf16.msra.mxu0 %v1350
          %1363 = vmatpush.bf16.msra.mxu0 %v1349
          %1364 = vmatmul.bf16.gmra.mxu0 %v1354
          %v1365 = vpop.f32.mrf.mxu0
          %v1366 = vadd.f32 %v1339, %v1365
          %v1367 = vpop.f32.mrf.mxu0
          %1368 = vdwg.mxu0
          %1369 = vst [vmem:[%s683] sm:$0xff] %v1366
        $region92: #{tpu_custom_call.1} parent=83 // pred_fallthru
          _
        %s1370 = sand.u32 %s456, 1
        %s1371 = scalar_lea.sflag [#allocation4], %s1370
        %s1372 = sand.u32 %s456, 1
        %s1373 = smul.addr %s1372, 8
        %s1374 = scalar_lea.vmem [#allocation3], %s1373
        // Predicated region
        $region93: #{tpu_custom_call.1} parent=83 // pred_check
          %p1375 = pneg %p466
        $region94: #{tpu_custom_call.1} parent=83 // pred_check_branch
          %1377 = sbr.rel (%p1375) target = $region96
        $region95: #{tpu_custom_call.1} parent=83 // pred_region
          %1379 = vsyncadd %s1371, 0
          %s1380 = smul.addr %s34, 8
          %s1381 = scalar_lea.hbm %s16, %s1380
          %s1383 = sshll.u32 %s1374, 4
          %s1384 = int_to_ptr.vmem [resolvable:$true] %s1383
          %s1385 = sshll.u32 %s1381, 4
          %s1386 = int_to_ptr.hbm [resolvable:$true] %s1385
          %1388 = dma.vmem_to_hbm [thread:$0]  %s1384, 128, %s1386, %s1371
        $region96: #{tpu_custom_call.1} parent=83 // pred_fallthru
          _
      $region84: #{tpu_custom_call.1} parent=5 // pred_fallthru
        _
      %p1389 = scmp.le.s32.totalorder 2, %s25
      // Predicated region
      $region97: #{tpu_custom_call.1} parent=5 // pred_check
        %p1390 = pneg %p1389
      $region98: #{tpu_custom_call.1} parent=5 // pred_check_branch
        %1392 = sbr.rel (%p1390) target = $region100
      $region99: #{tpu_custom_call.1} parent=5 // pred_region
        %s1393 = ssub.s32 %s25, 2
        // Predicated region
        $region101: #{tpu_custom_call.1} parent=99 // pred_check
          %p1394 = pneg %p472
        $region102: #{tpu_custom_call.1} parent=99 // pred_check_branch
          %1396 = sbr.rel (%p1394) target = $region104
        $region103: #{tpu_custom_call.1} parent=99 // pred_region
          %s1397 = sand.u32 %s457, 1
          %s1398 = scalar_lea.sflag [#allocation4], %s1397
          %s1399 = sand.u32 %s457, 1
          %s1400 = smul.addr %s1399, 8
          %s1401 = scalar_lea.vmem [#allocation3], %s1400
          %1403 = dma.done %s1398, 128
        $region104: #{tpu_custom_call.1} parent=99 // pred_fallthru
          _
      $region100: #{tpu_custom_call.1} parent=5 // pred_fallthru
        _
    $region6: #{tpu_custom_call.1} parent=1 // loop_footer
      %s29 = sadd.s32 1, %s25
    $region7: #{tpu_custom_call.1} parent=1 // loop_footer_branch
      %24 = sbr.rel target = $region3
    $region8: #{tpu_custom_call.1} parent=1 // loop_exit
      _
    %1404 = vsyncpa [#allocation4], 1
    %s1405 = scalar_lea.sflag [#allocation4], 1
    %1406 = vsyncpa %s1405, 1

</llo_original>
